<compile_context>
chip_gen: v7x
topology: tpu7x:2x2x1
jax: 0.10.0
libtpu: 0.0.40
codegen_flags: <defaults>
</compile_context>

<pallas_src>
import functools

import jax
import jax.numpy as jnp
from jax.experimental import pallas as pl
from jax.experimental.pallas import tpu as pltpu


def _point_block_kernel(x_ref, coords_ref, w_ref, b_ref, out_ref,
                        xconv_ref, xconvt_ref, xconv_bf_ref, *,
                        residual, img_h, img_w, hw_valid, jt):
    """Grid = (batch, hw-column-chunk).

    x_ref:        (c_pad, hwp)      one batch of activations, hw flattened+padded
    coords_ref:   (2, hwp) int32    row 0 = y, row 1 = x (out-of-range on padding)
    w_ref:        (c_pad, 9*c_pad)  conv weight, tap-major columns (ky*3+kx)
    b_ref:        (c_pad, 1)        conv bias
    out_ref:      (c_pad, jt)       output column chunk for this (batch, j)
    xconv_ref:    (c_pad, hwp) f32  conv output, persists across j steps
    xconvt_ref:   (hwp, c_pad) f32  its transpose (Gram LHS), hoisted
    xconv_bf_ref: (c_pad, hwp) bf16 bf16 copy for the attention matmul
    """
    c_pad, hwp = xconv_ref.shape
    j = pl.program_id(1)

    # ---- 3x3 conv (padding=1): one fused (c,9c)@(9c,hw) matmul per batch ----
    @pl.when(j == 0)
    def _conv():
        x = x_ref[...]                                       # (c_pad, hwp) f32
        yy = coords_ref[0:1, :]                              # (1, hwp) int32
        xx = coords_ref[1:2, :]
        taps = []
        for dy in (-1, 0, 1):
            for dx in (-1, 0, 1):
                s = dy * img_w + dx
                # shifted[p] = x[p + s]; wrapped / out-of-image taps masked out.
                sh = x if s == 0 else jnp.roll(x, -s, axis=1)
                ok = ((yy + dy >= 0) & (yy + dy < img_h) &
                      (xx + dx >= 0) & (xx + dx < img_w))
                taps.append(sh * ok.astype(jnp.float32))
        stacked = jnp.concatenate(taps, axis=0)              # (9*c_pad, hwp)
        xc = jnp.dot(w_ref[...], stacked,
                     preferred_element_type=jnp.float32) + b_ref[...]
        xconv_ref[...] = xc
        xconvt_ref[...] = xc.T                    # hoisted Gram-LHS transpose
        xconv_bf_ref[...] = xc.astype(jnp.bfloat16)

    # ---- Gram + softmax(dim=i) + attention for one jt-wide column chunk ----
    lo = pl.multiple_of(j * jt, 128)
    xj = xconv_ref[:, pl.ds(lo, jt)]                         # (c_pad, jt) f32
    # S[i, j] = sum_c X[c, i] * X[c, j]  (kept f32: the logits feed exp()).
    s_blk = jnp.dot(xconvt_ref[...], xj,
                    preferred_element_type=jnp.float32)      # (hwp, jt)
    if hwp > hw_valid:
        row_ids = jax.lax.broadcasted_iota(jnp.int32, (hwp, 1), 0)
        s_blk = jnp.where(row_ids < hw_valid, s_blk, jnp.float32(-1e30))
    m_col = jnp.max(s_blk, axis=0, keepdims=True)            # (1, jt)
    e = jnp.exp(s_blk - m_col)                                # (hwp, jt)
    denom = jnp.sum(e, axis=0, keepdims=True)                 # (1, jt)
    # out[c, j] = (sum_i X[c, i] * E[i, j]) * (1/denom[j])  -- deferred norm.
    o = jnp.dot(xconv_bf_ref[...], e.astype(jnp.bfloat16),
                preferred_element_type=jnp.float32)           # (c_pad, jt)
    o = o * pl.reciprocal(denom, approx=True)
    if residual:
        o = o + xj                               # residual adds the conv output
    out_ref[...] = o


def _vmem_capacity_bytes():
    """Per-core VMEM capacity; conservative fallback if the query fails."""
    try:
        cap = getattr(pltpu.get_tpu_info(), "vmem_capacity_bytes", None)
        if cap:
            return int(cap)
    except Exception:
        pass
    return 64 * 1024 * 1024            # v7x per-TensorCore size == safe minimum


def point_block(x, weight, bias, mode="residual"):
    b, c, h, w = x.shape
    hw = h * w
    hwp = ((hw + 127) // 128) * 128            # lane-dense spatial width
    c_pad = ((c + 7) // 8) * 8                 # sublane-aligned channel count

    vmem_cap = _vmem_capacity_bytes()

    def step_vmem_bytes(jt):
        blocks = (2 * c_pad * hwp * 4                        # x (double-buffered)
                  + 2 * c_pad * jt * 4                       # out
                  + 2 * (9 * c_pad * c_pad + c_pad * 128 + 8 * hwp) * 4)
        scratch = c_pad * hwp * 4 + hwp * c_pad * 4 + c_pad * hwp * 2
        temps = (2 * hwp * jt * 4                            # s_blk + e
                 + 9 * c_pad * hwp * 4                       # stacked taps
                 + 2 * c_pad * hwp * 4)                      # x value / conv value
        return blocks + scratch + temps

    jt = 128
    for cand in (512, 256, 128):               # bigger tiles on big-VMEM chips
        if hwp % cand == 0 and step_vmem_bytes(cand) <= vmem_cap // 2:
            jt = cand
            break
    num_j = hwp // jt

    vmem_limit = int(max(32 * 1024 * 1024,
                         min(vmem_cap * 4 // 5, 100 * 1024 * 1024)))

    # ---- operands ---------------------------------------------------------
    x_flat = x.reshape(b, c, hw).astype(jnp.float32)
    x_flat = jnp.pad(x_flat, ((0, 0), (0, c_pad - c), (0, hwp - hw)))
    x2d = x_flat.reshape(b * c_pad, hwp)

    # weight[co, ci, ky, kx] -> (co, ky, kx, ci) -> (co, 9*ci); zero-padded.
    w_pad = jnp.pad(weight.astype(jnp.float32),
                    ((0, c_pad - c), (0, c_pad - c), (0, 0), (0, 0)))
    w_cat = jnp.transpose(w_pad, (0, 2, 3, 1)).reshape(c_pad, 9 * c_pad)
    bias2d = jnp.pad(bias.astype(jnp.float32), (0, c_pad - c)).reshape(c_pad, 1)

    yy, xx = jnp.meshgrid(jnp.arange(h, dtype=jnp.int32),
                          jnp.arange(w, dtype=jnp.int32), indexing="ij")
    coords = jnp.stack([yy.reshape(hw), xx.reshape(hw)], axis=0)    # (2, hw)
    if hwp != hw:
        coords = jnp.pad(coords, ((0, 0), (0, hwp - hw)),
                         constant_values=jnp.int32(-4))  # padded -> all taps masked

    kernel = functools.partial(
        _point_block_kernel,
        residual=(mode == "residual"), img_h=h, img_w=w, hw_valid=hw, jt=jt)

    cost = pl.CostEstimate(
        flops=int(2 * b * (9 * c_pad * c_pad * hwp + 2 * c_pad * hwp * hwp)),
        transcendentals=int(b * hwp * hwp),
        bytes_accessed=int(2 * b * c_pad * hwp * 4))

    out = pl.pallas_call(
        kernel,
        out_shape=jax.ShapeDtypeStruct((b * c_pad, hwp), jnp.float32),
        grid_spec=pltpu.PrefetchScalarGridSpec(
            num_scalar_prefetch=0,
            grid=(b, num_j),                   # batch outer, column chunk inner
            in_specs=[
                pl.BlockSpec((c_pad, hwp), lambda i, j: (i, 0)),        # x
                pl.BlockSpec((2, hwp), lambda i, j: (0, 0)),            # coords
                pl.BlockSpec((c_pad, 9 * c_pad), lambda i, j: (0, 0)),  # weight
                pl.BlockSpec((c_pad, 1), lambda i, j: (0, 0)),          # bias
            ],
            out_specs=pl.BlockSpec((c_pad, jt), lambda i, j: (i, j)),
            scratch_shapes=[
                pltpu.VMEM((c_pad, hwp), jnp.float32),     # conv output
                pltpu.VMEM((hwp, c_pad), jnp.float32),     # its transpose
                pltpu.VMEM((c_pad, hwp), jnp.bfloat16),    # bf16 copy for attn
            ],
        ),
        compiler_params=pltpu.CompilerParams(
            dimension_semantics=("parallel", "arbitrary"),
            vmem_limit_bytes=vmem_limit),
        cost_estimate=cost,
    )(x2d, coords, w_cat, bias2d)

    return out.reshape(b, c_pad, hwp)[:, :c, :hw].reshape(b, c, h, w)


def point_block_ref(x, weight, bias, mode="residual"):
    # Plain-JAX reference mirroring the PyTorch forward.
    b, c, h, w = x.shape
    xc = jax.lax.conv_general_dilated(
        x, weight, window_strides=(1, 1), padding="SAME",
        dimension_numbers=("NCHW", "OIHW", "NCHW"),
        precision=jax.lax.Precision.HIGHEST) + bias.reshape(1, c, 1, 1)
    X = xc.reshape(b, c, h * w)
    S = jnp.einsum("bci,bcj->bij", X, X, precision=jax.lax.Precision.HIGHEST)
    A = jax.nn.softmax(S, axis=1)
    out = jnp.einsum("bci,bij->bcj", X, A, precision=jax.lax.Precision.HIGHEST)
    out = out.reshape(b, c, h, w)
    return out + xc if mode == "residual" else out


if __name__ == "__main__":
    key = jax.random.PRNGKey(0)
    kx, kw, kb = jax.random.split(key, 3)
    b, c, h, w = 2, 4, 16, 16

    x = jax.random.normal(kx, (b, c, h, w), dtype=jnp.float32)
    # Deterministic synthetic parameters (Conv2d(c, c, 3, padding=1) shapes).
    weight = 0.1 * jax.random.normal(kw, (c, c, 3, 3), dtype=jnp.float32)
    bias = 0.1 * jax.random.normal(kb, (c,), dtype=jnp.float32)

    for mode in ("residual", "plain"):
        out = jax.block_until_ready(point_block(x, weight, bias, mode=mode))
        ref = point_block_ref(x, weight, bias, mode=mode)
        assert out.shape == (b, c, h, w)
        err = float(jnp.max(jnp.abs(out - ref)))
        assert jnp.allclose(out, ref, atol=1e-2, rtol=1e-2), (mode, err)

    print("KERNEL_OK")
</pallas_src>

<mosaic_0001>
module attributes {stable_mosaic.version = 11 : i64} {
  func.func @_point_block_kernel(%arg0: i32, %arg1: i32, %arg2: memref<8x256xf32, #tpu.memory_space<vmem>>, %arg3: memref<2x256xi32, #tpu.memory_space<vmem>>, %arg4: memref<8x72xf32, #tpu.memory_space<vmem>>, %arg5: memref<8x1xf32, #tpu.memory_space<vmem>>, %arg6: memref<8x256xf32, #tpu.memory_space<vmem>>, %arg7: memref<8x256xf32, #tpu.memory_space<vmem>>, %arg8: memref<256x8xf32, #tpu.memory_space<vmem>>, %arg9: memref<8x256xbf16, #tpu.memory_space<vmem>>) attributes {dimension_semantics = [#tpu.dimension_semantics<parallel>, #tpu.dimension_semantics<arbitrary>], iteration_bounds = array<i64: 2, 1>, scalar_prefetch = 0 : i64, scratch_operands = 3 : i64, tpu.core_type = #tpu.core_type<tc>, window_params = [{transform_indices = @transform_0, window_bounds = array<i64: 8, 256>}, {pipeline_mode = #tpu.pipeline_mode<synchronous>, transform_indices = @transform_1, window_bounds = array<i64: 2, 256>}, {pipeline_mode = #tpu.pipeline_mode<synchronous>, transform_indices = @transform_2, window_bounds = array<i64: 8, 72>}, {pipeline_mode = #tpu.pipeline_mode<synchronous>, transform_indices = @transform_3, window_bounds = array<i64: 8, 1>}, {transform_indices = @transform_4, window_bounds = array<i64: 8, 256>}]} {
    %c0_i32 = arith.constant 0 : i32
    %0 = arith.cmpi eq, %arg1, %c0_i32 : i32
    %1 = arith.extui %0 : i1 to i32
    %c0_i32_0 = arith.constant 0 : i32
    %2 = arith.cmpi ne, %1, %c0_i32_0 : i32
    scf.if %2 {
      %c0_10 = arith.constant 0 : index
      %c0_11 = arith.constant 0 : index
      %24 = vector.load %arg2[%c0_10, %c0_11] : memref<8x256xf32, #tpu.memory_space<vmem>>, vector<8x256xf32>
      %c0_12 = arith.constant 0 : index
      %c0_13 = arith.constant 0 : index
      %25 = vector.load %arg3[%c0_12, %c0_13] : memref<2x256xi32, #tpu.memory_space<vmem>>, vector<1x256xi32>
      %c1 = arith.constant 1 : index
      %c0_14 = arith.constant 0 : index
      %26 = vector.load %arg3[%c1, %c0_14] : memref<2x256xi32, #tpu.memory_space<vmem>>, vector<1x256xi32>
      %27 = vector.extract_strided_slice %24 {offsets = [0, 239], sizes = [8, 17], strides = [1, 1]} : vector<8x256xf32> to vector<8x17xf32>
      %28 = vector.extract_strided_slice %24 {offsets = [0, 0], sizes = [8, 239], strides = [1, 1]} : vector<8x256xf32> to vector<8x239xf32>
      %29 = tpu.concatenate %27, %28 in 1 : vector<8x17xf32>, vector<8x239xf32> -> vector<8x256xf32>
      %c-1_i32 = arith.constant -1 : i32
      %30 = vector.broadcast %c-1_i32 : i32 to vector<1x256xi32>
      %31 = arith.addi %25, %30 : vector<1x256xi32>
      %c0_i32_15 = arith.constant 0 : i32
      %32 = vector.broadcast %c0_i32_15 : i32 to vector<1x256xi32>
      %33 = arith.cmpi sge, %31, %32 : vector<1x256xi32>
      %c-1_i32_16 = arith.constant -1 : i32
      %34 = vector.broadcast %c-1_i32_16 : i32 to vector<1x256xi32>
      %35 = arith.addi %25, %34 : vector<1x256xi32>
      %c16_i32 = arith.constant 16 : i32
      %36 = vector.broadcast %c16_i32 : i32 to vector<1x256xi32>
      %37 = arith.cmpi slt, %35, %36 : vector<1x256xi32>
      %38 = arith.andi %33, %37 : vector<1x256xi1>
      %c-1_i32_17 = arith.constant -1 : i32
      %39 = vector.broadcast %c-1_i32_17 : i32 to vector<1x256xi32>
      %40 = arith.addi %26, %39 : vector<1x256xi32>
      %c0_i32_18 = arith.constant 0 : i32
      %41 = vector.broadcast %c0_i32_18 : i32 to vector<1x256xi32>
      %42 = arith.cmpi sge, %40, %41 : vector<1x256xi32>
      %43 = arith.andi %38, %42 : vector<1x256xi1>
      %c-1_i32_19 = arith.constant -1 : i32
      %44 = vector.broadcast %c-1_i32_19 : i32 to vector<1x256xi32>
      %45 = arith.addi %26, %44 : vector<1x256xi32>
      %c16_i32_20 = arith.constant 16 : i32
      %46 = vector.broadcast %c16_i32_20 : i32 to vector<1x256xi32>
      %47 = arith.cmpi slt, %45, %46 : vector<1x256xi32>
      %48 = arith.andi %43, %47 : vector<1x256xi1>
      %49 = arith.extui %48 : vector<1x256xi1> to vector<1x256xi32>
      %50 = arith.sitofp %49 : vector<1x256xi32> to vector<1x256xf32>
      %51 = vector.broadcast %50 : vector<1x256xf32> to vector<8x256xf32>
      %52 = arith.mulf %29, %51 : vector<8x256xf32>
      %53 = vector.extract_strided_slice %24 {offsets = [0, 240], sizes = [8, 16], strides = [1, 1]} : vector<8x256xf32> to vector<8x16xf32>
      %54 = vector.extract_strided_slice %24 {offsets = [0, 0], sizes = [8, 240], strides = [1, 1]} : vector<8x256xf32> to vector<8x240xf32>
      %55 = tpu.concatenate %53, %54 in 1 : vector<8x16xf32>, vector<8x240xf32> -> vector<8x256xf32>
      %c-1_i32_21 = arith.constant -1 : i32
      %56 = vector.broadcast %c-1_i32_21 : i32 to vector<1x256xi32>
      %57 = arith.addi %25, %56 : vector<1x256xi32>
      %c0_i32_22 = arith.constant 0 : i32
      %58 = vector.broadcast %c0_i32_22 : i32 to vector<1x256xi32>
      %59 = arith.cmpi sge, %57, %58 : vector<1x256xi32>
      %c-1_i32_23 = arith.constant -1 : i32
      %60 = vector.broadcast %c-1_i32_23 : i32 to vector<1x256xi32>
      %61 = arith.addi %25, %60 : vector<1x256xi32>
      %c16_i32_24 = arith.constant 16 : i32
      %62 = vector.broadcast %c16_i32_24 : i32 to vector<1x256xi32>
      %63 = arith.cmpi slt, %61, %62 : vector<1x256xi32>
      %64 = arith.andi %59, %63 : vector<1x256xi1>
      %c0_i32_25 = arith.constant 0 : i32
      %65 = vector.broadcast %c0_i32_25 : i32 to vector<1x256xi32>
      %66 = arith.addi %26, %65 : vector<1x256xi32>
      %c0_i32_26 = arith.constant 0 : i32
      %67 = vector.broadcast %c0_i32_26 : i32 to vector<1x256xi32>
      %68 = arith.cmpi sge, %66, %67 : vector<1x256xi32>
      %69 = arith.andi %64, %68 : vector<1x256xi1>
      %c0_i32_27 = arith.constant 0 : i32
      %70 = vector.broadcast %c0_i32_27 : i32 to vector<1x256xi32>
      %71 = arith.addi %26, %70 : vector<1x256xi32>
      %c16_i32_28 = arith.constant 16 : i32
      %72 = vector.broadcast %c16_i32_28 : i32 to vector<1x256xi32>
      %73 = arith.cmpi slt, %71, %72 : vector<1x256xi32>
      %74 = arith.andi %69, %73 : vector<1x256xi1>
      %75 = arith.extui %74 : vector<1x256xi1> to vector<1x256xi32>
      %76 = arith.sitofp %75 : vector<1x256xi32> to vector<1x256xf32>
      %77 = vector.broadcast %76 : vector<1x256xf32> to vector<8x256xf32>
      %78 = arith.mulf %55, %77 : vector<8x256xf32>
      %79 = vector.extract_strided_slice %24 {offsets = [0, 241], sizes = [8, 15], strides = [1, 1]} : vector<8x256xf32> to vector<8x15xf32>
      %80 = vector.extract_strided_slice %24 {offsets = [0, 0], sizes = [8, 241], strides = [1, 1]} : vector<8x256xf32> to vector<8x241xf32>
      %81 = tpu.concatenate %79, %80 in 1 : vector<8x15xf32>, vector<8x241xf32> -> vector<8x256xf32>
      %c-1_i32_29 = arith.constant -1 : i32
      %82 = vector.broadcast %c-1_i32_29 : i32 to vector<1x256xi32>
      %83 = arith.addi %25, %82 : vector<1x256xi32>
      %c0_i32_30 = arith.constant 0 : i32
      %84 = vector.broadcast %c0_i32_30 : i32 to vector<1x256xi32>
      %85 = arith.cmpi sge, %83, %84 : vector<1x256xi32>
      %c-1_i32_31 = arith.constant -1 : i32
      %86 = vector.broadcast %c-1_i32_31 : i32 to vector<1x256xi32>
      %87 = arith.addi %25, %86 : vector<1x256xi32>
      %c16_i32_32 = arith.constant 16 : i32
      %88 = vector.broadcast %c16_i32_32 : i32 to vector<1x256xi32>
      %89 = arith.cmpi slt, %87, %88 : vector<1x256xi32>
      %90 = arith.andi %85, %89 : vector<1x256xi1>
      %c1_i32 = arith.constant 1 : i32
      %91 = vector.broadcast %c1_i32 : i32 to vector<1x256xi32>
      %92 = arith.addi %26, %91 : vector<1x256xi32>
      %c0_i32_33 = arith.constant 0 : i32
      %93 = vector.broadcast %c0_i32_33 : i32 to vector<1x256xi32>
      %94 = arith.cmpi sge, %92, %93 : vector<1x256xi32>
      %95 = arith.andi %90, %94 : vector<1x256xi1>
      %c1_i32_34 = arith.constant 1 : i32
      %96 = vector.broadcast %c1_i32_34 : i32 to vector<1x256xi32>
      %97 = arith.addi %26, %96 : vector<1x256xi32>
      %c16_i32_35 = arith.constant 16 : i32
      %98 = vector.broadcast %c16_i32_35 : i32 to vector<1x256xi32>
      %99 = arith.cmpi slt, %97, %98 : vector<1x256xi32>
      %100 = arith.andi %95, %99 : vector<1x256xi1>
      %101 = arith.extui %100 : vector<1x256xi1> to vector<1x256xi32>
      %102 = arith.sitofp %101 : vector<1x256xi32> to vector<1x256xf32>
      %103 = vector.broadcast %102 : vector<1x256xf32> to vector<8x256xf32>
      %104 = arith.mulf %81, %103 : vector<8x256xf32>
      %105 = vector.extract_strided_slice %24 {offsets = [0, 255], sizes = [8, 1], strides = [1, 1]} : vector<8x256xf32> to vector<8x1xf32>
      %106 = vector.extract_strided_slice %24 {offsets = [0, 0], sizes = [8, 255], strides = [1, 1]} : vector<8x256xf32> to vector<8x255xf32>
      %107 = tpu.concatenate %105, %106 in 1 : vector<8x1xf32>, vector<8x255xf32> -> vector<8x256xf32>
      %c0_i32_36 = arith.constant 0 : i32
      %108 = vector.broadcast %c0_i32_36 : i32 to vector<1x256xi32>
      %109 = arith.addi %25, %108 : vector<1x256xi32>
      %c0_i32_37 = arith.constant 0 : i32
      %110 = vector.broadcast %c0_i32_37 : i32 to vector<1x256xi32>
      %111 = arith.cmpi sge, %109, %110 : vector<1x256xi32>
      %c0_i32_38 = arith.constant 0 : i32
      %112 = vector.broadcast %c0_i32_38 : i32 to vector<1x256xi32>
      %113 = arith.addi %25, %112 : vector<1x256xi32>
      %c16_i32_39 = arith.constant 16 : i32
      %114 = vector.broadcast %c16_i32_39 : i32 to vector<1x256xi32>
      %115 = arith.cmpi slt, %113, %114 : vector<1x256xi32>
      %116 = arith.andi %111, %115 : vector<1x256xi1>
      %c-1_i32_40 = arith.constant -1 : i32
      %117 = vector.broadcast %c-1_i32_40 : i32 to vector<1x256xi32>
      %118 = arith.addi %26, %117 : vector<1x256xi32>
      %c0_i32_41 = arith.constant 0 : i32
      %119 = vector.broadcast %c0_i32_41 : i32 to vector<1x256xi32>
      %120 = arith.cmpi sge, %118, %119 : vector<1x256xi32>
      %121 = arith.andi %116, %120 : vector<1x256xi1>
      %c-1_i32_42 = arith.constant -1 : i32
      %122 = vector.broadcast %c-1_i32_42 : i32 to vector<1x256xi32>
      %123 = arith.addi %26, %122 : vector<1x256xi32>
      %c16_i32_43 = arith.constant 16 : i32
      %124 = vector.broadcast %c16_i32_43 : i32 to vector<1x256xi32>
      %125 = arith.cmpi slt, %123, %124 : vector<1x256xi32>
      %126 = arith.andi %121, %125 : vector<1x256xi1>
      %127 = arith.extui %126 : vector<1x256xi1> to vector<1x256xi32>
      %128 = arith.sitofp %127 : vector<1x256xi32> to vector<1x256xf32>
      %129 = vector.broadcast %128 : vector<1x256xf32> to vector<8x256xf32>
      %130 = arith.mulf %107, %129 : vector<8x256xf32>
      %c0_i32_44 = arith.constant 0 : i32
      %131 = vector.broadcast %c0_i32_44 : i32 to vector<1x256xi32>
      %132 = arith.addi %25, %131 : vector<1x256xi32>
      %c0_i32_45 = arith.constant 0 : i32
      %133 = vector.broadcast %c0_i32_45 : i32 to vector<1x256xi32>
      %134 = arith.cmpi sge, %132, %133 : vector<1x256xi32>
      %c0_i32_46 = arith.constant 0 : i32
      %135 = vector.broadcast %c0_i32_46 : i32 to vector<1x256xi32>
      %136 = arith.addi %25, %135 : vector<1x256xi32>
      %c16_i32_47 = arith.constant 16 : i32
      %137 = vector.broadcast %c16_i32_47 : i32 to vector<1x256xi32>
      %138 = arith.cmpi slt, %136, %137 : vector<1x256xi32>
      %139 = arith.andi %134, %138 : vector<1x256xi1>
      %c0_i32_48 = arith.constant 0 : i32
      %140 = vector.broadcast %c0_i32_48 : i32 to vector<1x256xi32>
      %141 = arith.addi %26, %140 : vector<1x256xi32>
      %c0_i32_49 = arith.constant 0 : i32
      %142 = vector.broadcast %c0_i32_49 : i32 to vector<1x256xi32>
      %143 = arith.cmpi sge, %141, %142 : vector<1x256xi32>
      %144 = arith.andi %139, %143 : vector<1x256xi1>
      %c0_i32_50 = arith.constant 0 : i32
      %145 = vector.broadcast %c0_i32_50 : i32 to vector<1x256xi32>
      %146 = arith.addi %26, %145 : vector<1x256xi32>
      %c16_i32_51 = arith.constant 16 : i32
      %147 = vector.broadcast %c16_i32_51 : i32 to vector<1x256xi32>
      %148 = arith.cmpi slt, %146, %147 : vector<1x256xi32>
      %149 = arith.andi %144, %148 : vector<1x256xi1>
      %150 = arith.extui %149 : vector<1x256xi1> to vector<1x256xi32>
      %151 = arith.sitofp %150 : vector<1x256xi32> to vector<1x256xf32>
      %152 = vector.broadcast %151 : vector<1x256xf32> to vector<8x256xf32>
      %153 = arith.mulf %24, %152 : vector<8x256xf32>
      %154 = vector.extract_strided_slice %24 {offsets = [0, 1], sizes = [8, 255], strides = [1, 1]} : vector<8x256xf32> to vector<8x255xf32>
      %155 = vector.extract_strided_slice %24 {offsets = [0, 0], sizes = [8, 1], strides = [1, 1]} : vector<8x256xf32> to vector<8x1xf32>
      %156 = tpu.concatenate %154, %155 in 1 : vector<8x255xf32>, vector<8x1xf32> -> vector<8x256xf32>
      %c0_i32_52 = arith.constant 0 : i32
      %157 = vector.broadcast %c0_i32_52 : i32 to vector<1x256xi32>
      %158 = arith.addi %25, %157 : vector<1x256xi32>
      %c0_i32_53 = arith.constant 0 : i32
      %159 = vector.broadcast %c0_i32_53 : i32 to vector<1x256xi32>
      %160 = arith.cmpi sge, %158, %159 : vector<1x256xi32>
      %c0_i32_54 = arith.constant 0 : i32
      %161 = vector.broadcast %c0_i32_54 : i32 to vector<1x256xi32>
      %162 = arith.addi %25, %161 : vector<1x256xi32>
      %c16_i32_55 = arith.constant 16 : i32
      %163 = vector.broadcast %c16_i32_55 : i32 to vector<1x256xi32>
      %164 = arith.cmpi slt, %162, %163 : vector<1x256xi32>
      %165 = arith.andi %160, %164 : vector<1x256xi1>
      %c1_i32_56 = arith.constant 1 : i32
      %166 = vector.broadcast %c1_i32_56 : i32 to vector<1x256xi32>
      %167 = arith.addi %26, %166 : vector<1x256xi32>
      %c0_i32_57 = arith.constant 0 : i32
      %168 = vector.broadcast %c0_i32_57 : i32 to vector<1x256xi32>
      %169 = arith.cmpi sge, %167, %168 : vector<1x256xi32>
      %170 = arith.andi %165, %169 : vector<1x256xi1>
      %c1_i32_58 = arith.constant 1 : i32
      %171 = vector.broadcast %c1_i32_58 : i32 to vector<1x256xi32>
      %172 = arith.addi %26, %171 : vector<1x256xi32>
      %c16_i32_59 = arith.constant 16 : i32
      %173 = vector.broadcast %c16_i32_59 : i32 to vector<1x256xi32>
      %174 = arith.cmpi slt, %172, %173 : vector<1x256xi32>
      %175 = arith.andi %170, %174 : vector<1x256xi1>
      %176 = arith.extui %175 : vector<1x256xi1> to vector<1x256xi32>
      %177 = arith.sitofp %176 : vector<1x256xi32> to vector<1x256xf32>
      %178 = vector.broadcast %177 : vector<1x256xf32> to vector<8x256xf32>
      %179 = arith.mulf %156, %178 : vector<8x256xf32>
      %180 = vector.extract_strided_slice %24 {offsets = [0, 15], sizes = [8, 241], strides = [1, 1]} : vector<8x256xf32> to vector<8x241xf32>
      %181 = vector.extract_strided_slice %24 {offsets = [0, 0], sizes = [8, 15], strides = [1, 1]} : vector<8x256xf32> to vector<8x15xf32>
      %182 = tpu.concatenate %180, %181 in 1 : vector<8x241xf32>, vector<8x15xf32> -> vector<8x256xf32>
      %c1_i32_60 = arith.constant 1 : i32
      %183 = vector.broadcast %c1_i32_60 : i32 to vector<1x256xi32>
      %184 = arith.addi %25, %183 : vector<1x256xi32>
      %c0_i32_61 = arith.constant 0 : i32
      %185 = vector.broadcast %c0_i32_61 : i32 to vector<1x256xi32>
      %186 = arith.cmpi sge, %184, %185 : vector<1x256xi32>
      %c1_i32_62 = arith.constant 1 : i32
      %187 = vector.broadcast %c1_i32_62 : i32 to vector<1x256xi32>
      %188 = arith.addi %25, %187 : vector<1x256xi32>
      %c16_i32_63 = arith.constant 16 : i32
      %189 = vector.broadcast %c16_i32_63 : i32 to vector<1x256xi32>
      %190 = arith.cmpi slt, %188, %189 : vector<1x256xi32>
      %191 = arith.andi %186, %190 : vector<1x256xi1>
      %c-1_i32_64 = arith.constant -1 : i32
      %192 = vector.broadcast %c-1_i32_64 : i32 to vector<1x256xi32>
      %193 = arith.addi %26, %192 : vector<1x256xi32>
      %c0_i32_65 = arith.constant 0 : i32
      %194 = vector.broadcast %c0_i32_65 : i32 to vector<1x256xi32>
      %195 = arith.cmpi sge, %193, %194 : vector<1x256xi32>
      %196 = arith.andi %191, %195 : vector<1x256xi1>
      %c-1_i32_66 = arith.constant -1 : i32
      %197 = vector.broadcast %c-1_i32_66 : i32 to vector<1x256xi32>
      %198 = arith.addi %26, %197 : vector<1x256xi32>
      %c16_i32_67 = arith.constant 16 : i32
      %199 = vector.broadcast %c16_i32_67 : i32 to vector<1x256xi32>
      %200 = arith.cmpi slt, %198, %199 : vector<1x256xi32>
      %201 = arith.andi %196, %200 : vector<1x256xi1>
      %202 = arith.extui %201 : vector<1x256xi1> to vector<1x256xi32>
      %203 = arith.sitofp %202 : vector<1x256xi32> to vector<1x256xf32>
      %204 = vector.broadcast %203 : vector<1x256xf32> to vector<8x256xf32>
      %205 = arith.mulf %182, %204 : vector<8x256xf32>
      %206 = vector.extract_strided_slice %24 {offsets = [0, 16], sizes = [8, 240], strides = [1, 1]} : vector<8x256xf32> to vector<8x240xf32>
      %207 = vector.extract_strided_slice %24 {offsets = [0, 0], sizes = [8, 16], strides = [1, 1]} : vector<8x256xf32> to vector<8x16xf32>
      %208 = tpu.concatenate %206, %207 in 1 : vector<8x240xf32>, vector<8x16xf32> -> vector<8x256xf32>
      %c1_i32_68 = arith.constant 1 : i32
      %209 = vector.broadcast %c1_i32_68 : i32 to vector<1x256xi32>
      %210 = arith.addi %25, %209 : vector<1x256xi32>
      %c0_i32_69 = arith.constant 0 : i32
      %211 = vector.broadcast %c0_i32_69 : i32 to vector<1x256xi32>
      %212 = arith.cmpi sge, %210, %211 : vector<1x256xi32>
      %c1_i32_70 = arith.constant 1 : i32
      %213 = vector.broadcast %c1_i32_70 : i32 to vector<1x256xi32>
      %214 = arith.addi %25, %213 : vector<1x256xi32>
      %c16_i32_71 = arith.constant 16 : i32
      %215 = vector.broadcast %c16_i32_71 : i32 to vector<1x256xi32>
      %216 = arith.cmpi slt, %214, %215 : vector<1x256xi32>
      %217 = arith.andi %212, %216 : vector<1x256xi1>
      %c0_i32_72 = arith.constant 0 : i32
      %218 = vector.broadcast %c0_i32_72 : i32 to vector<1x256xi32>
      %219 = arith.addi %26, %218 : vector<1x256xi32>
      %c0_i32_73 = arith.constant 0 : i32
      %220 = vector.broadcast %c0_i32_73 : i32 to vector<1x256xi32>
      %221 = arith.cmpi sge, %219, %220 : vector<1x256xi32>
      %222 = arith.andi %217, %221 : vector<1x256xi1>
      %c0_i32_74 = arith.constant 0 : i32
      %223 = vector.broadcast %c0_i32_74 : i32 to vector<1x256xi32>
      %224 = arith.addi %26, %223 : vector<1x256xi32>
      %c16_i32_75 = arith.constant 16 : i32
      %225 = vector.broadcast %c16_i32_75 : i32 to vector<1x256xi32>
      %226 = arith.cmpi slt, %224, %225 : vector<1x256xi32>
      %227 = arith.andi %222, %226 : vector<1x256xi1>
      %228 = arith.extui %227 : vector<1x256xi1> to vector<1x256xi32>
      %229 = arith.sitofp %228 : vector<1x256xi32> to vector<1x256xf32>
      %230 = vector.broadcast %229 : vector<1x256xf32> to vector<8x256xf32>
      %231 = arith.mulf %208, %230 : vector<8x256xf32>
      %232 = vector.extract_strided_slice %24 {offsets = [0, 17], sizes = [8, 239], strides = [1, 1]} : vector<8x256xf32> to vector<8x239xf32>
      %233 = vector.extract_strided_slice %24 {offsets = [0, 0], sizes = [8, 17], strides = [1, 1]} : vector<8x256xf32> to vector<8x17xf32>
      %234 = tpu.concatenate %232, %233 in 1 : vector<8x239xf32>, vector<8x17xf32> -> vector<8x256xf32>
      %c1_i32_76 = arith.constant 1 : i32
      %235 = vector.broadcast %c1_i32_76 : i32 to vector<1x256xi32>
      %236 = arith.addi %25, %235 : vector<1x256xi32>
      %c0_i32_77 = arith.constant 0 : i32
      %237 = vector.broadcast %c0_i32_77 : i32 to vector<1x256xi32>
      %238 = arith.cmpi sge, %236, %237 : vector<1x256xi32>
      %c1_i32_78 = arith.constant 1 : i32
      %239 = vector.broadcast %c1_i32_78 : i32 to vector<1x256xi32>
      %240 = arith.addi %25, %239 : vector<1x256xi32>
      %c16_i32_79 = arith.constant 16 : i32
      %241 = vector.broadcast %c16_i32_79 : i32 to vector<1x256xi32>
      %242 = arith.cmpi slt, %240, %241 : vector<1x256xi32>
      %243 = arith.andi %238, %242 : vector<1x256xi1>
      %c1_i32_80 = arith.constant 1 : i32
      %244 = vector.broadcast %c1_i32_80 : i32 to vector<1x256xi32>
      %245 = arith.addi %26, %244 : vector<1x256xi32>
      %c0_i32_81 = arith.constant 0 : i32
      %246 = vector.broadcast %c0_i32_81 : i32 to vector<1x256xi32>
      %247 = arith.cmpi sge, %245, %246 : vector<1x256xi32>
      %248 = arith.andi %243, %247 : vector<1x256xi1>
      %c1_i32_82 = arith.constant 1 : i32
      %249 = vector.broadcast %c1_i32_82 : i32 to vector<1x256xi32>
      %250 = arith.addi %26, %249 : vector<1x256xi32>
      %c16_i32_83 = arith.constant 16 : i32
      %251 = vector.broadcast %c16_i32_83 : i32 to vector<1x256xi32>
      %252 = arith.cmpi slt, %250, %251 : vector<1x256xi32>
      %253 = arith.andi %248, %252 : vector<1x256xi1>
      %254 = arith.extui %253 : vector<1x256xi1> to vector<1x256xi32>
      %255 = arith.sitofp %254 : vector<1x256xi32> to vector<1x256xf32>
      %256 = vector.broadcast %255 : vector<1x256xf32> to vector<8x256xf32>
      %257 = arith.mulf %234, %256 : vector<8x256xf32>
      %258 = tpu.concatenate %52, %78, %104, %130, %153, %179, %205, %231, %257 in 0 : vector<8x256xf32>, vector<8x256xf32>, vector<8x256xf32>, vector<8x256xf32>, vector<8x256xf32>, vector<8x256xf32>, vector<8x256xf32>, vector<8x256xf32>, vector<8x256xf32> -> vector<72x256xf32>
      %c0_84 = arith.constant 0 : index
      %c0_85 = arith.constant 0 : index
      %259 = vector.load %arg4[%c0_84, %c0_85] : memref<8x72xf32, #tpu.memory_space<vmem>>, vector<8x72xf32>
      %cst_86 = arith.constant dense<0.000000e+00> : vector<8x256xf32>
      %260 = tpu.matmul %259, %258, %cst_86 {dimension_numbers = #tpu.dot_dimension_numbers<[1], [0], [0], [1], [0, 0, 1, 1], [], []>} : vector<8x72xf32>, vector<72x256xf32>, vector<8x256xf32> -> vector<8x256xf32>
      %c0_87 = arith.constant 0 : index
      %c0_88 = arith.constant 0 : index
      %261 = vector.load %arg5[%c0_87, %c0_88] : memref<8x1xf32, #tpu.memory_space<vmem>>, vector<8x1xf32>
      %262 = vector.broadcast %261 : vector<8x1xf32> to vector<8x256xf32>
      %263 = arith.addf %260, %262 : vector<8x256xf32>
      %c0_89 = arith.constant 0 : index
      %c0_90 = arith.constant 0 : index
      %264 = vector.load %arg7[%c0_89, %c0_90] : memref<8x256xf32, #tpu.memory_space<vmem>>, vector<8x256xf32>
      tpu.vector_store %arg7[%c0_89, %c0_90], %263 {strides = array<i32>} : memref<8x256xf32, #tpu.memory_space<vmem>>, vector<8x256xf32>,
      %265 = tpu.transpose %263, [1, 0] : vector<8x256xf32> -> vector<256x8xf32>
      %c0_91 = arith.constant 0 : index
      %c0_92 = arith.constant 0 : index
      %266 = vector.load %arg8[%c0_91, %c0_92] : memref<256x8xf32, #tpu.memory_space<vmem>>, vector<256x8xf32>
      tpu.vector_store %arg8[%c0_91, %c0_92], %265 {strides = array<i32>} : memref<256x8xf32, #tpu.memory_space<vmem>>, vector<256x8xf32>,
      %267 = arith.truncf %263 : vector<8x256xf32> to vector<8x256xbf16>
      %c0_93 = arith.constant 0 : index
      %c0_94 = arith.constant 0 : index
      %268 = vector.load %arg9[%c0_93, %c0_94] : memref<8x256xbf16, #tpu.memory_space<vmem>>, vector<8x256xbf16>
      tpu.vector_store %arg9[%c0_93, %c0_94], %267 {strides = array<i32>} : memref<8x256xbf16, #tpu.memory_space<vmem>>, vector<8x256xbf16>,
    } else {
    }
    %c256_i32 = arith.constant 256 : i32
    %3 = arith.muli %arg1, %c256_i32 : i32
    %4 = tpu.assume_multiple %3, 128 : i32
    %c0 = arith.constant 0 : index
    %5 = arith.index_cast %4 : i32 to index
    %6 = vector.load %arg7[%c0, %5] : memref<8x256xf32, #tpu.memory_space<vmem>>, vector<8x256xf32>
    %c0_1 = arith.constant 0 : index
    %c0_2 = arith.constant 0 : index
    %7 = vector.load %arg8[%c0_1, %c0_2] : memref<256x8xf32, #tpu.memory_space<vmem>>, vector<256x8xf32>
    %cst = arith.constant dense<0.000000e+00> : vector<256x256xf32>
    %8 = tpu.matmul %7, %6, %cst {dimension_numbers = #tpu.dot_dimension_numbers<[1], [0], [0], [1], [0, 0, 1, 1], [], []>} : vector<256x8xf32>, vector<8x256xf32>, vector<256x256xf32> -> vector<256x256xf32>
    %cst_3 = arith.constant dense<0xFF800000> : vector<256xf32>
    %9 = vector.multi_reduction <maximumf>, %8, %cst_3 [0] : vector<256x256xf32> to vector<256xf32>
    %10 = vector.shape_cast %9 : vector<256xf32> to vector<1x256xf32>
    %11 = vector.broadcast %10 : vector<1x256xf32> to vector<256x256xf32>
    %12 = arith.subf %8, %11 : vector<256x256xf32>
    %13 = math.exp %12 : vector<256x256xf32>
    %cst_4 = arith.constant dense<0.000000e+00> : vector<256xf32>
    %14 = vector.multi_reduction <add>, %13, %cst_4 [0] : vector<256x256xf32> to vector<256xf32>
    %15 = vector.shape_cast %14 : vector<256xf32> to vector<1x256xf32>
    %c0_5 = arith.constant 0 : index
    %c0_6 = arith.constant 0 : index
    %16 = vector.load %arg9[%c0_5, %c0_6] : memref<8x256xbf16, #tpu.memory_space<vmem>>, vector<8x256xbf16>
    %17 = arith.truncf %13 : vector<256x256xf32> to vector<256x256xbf16>
    %cst_7 = arith.constant dense<0.000000e+00> : vector<8x256xf32>
    %18 = tpu.matmul %16, %17, %cst_7 {dimension_numbers = #tpu.dot_dimension_numbers<[1], [0], [0], [1], [0, 0, 1, 1], [], []>} : vector<8x256xbf16>, vector<256x256xbf16>, vector<8x256xf32> -> vector<8x256xf32>
    %19 = tpu.reciprocal %15 {approx = true} : vector<1x256xf32> -> vector<1x256xf32>
    %20 = vector.broadcast %19 : vector<1x256xf32> to vector<8x256xf32>
    %21 = arith.mulf %18, %20 : vector<8x256xf32>
    %22 = arith.addf %21, %6 : vector<8x256xf32>
    %c0_8 = arith.constant 0 : index
    %c0_9 = arith.constant 0 : index
    %23 = vector.load %arg6[%c0_8, %c0_9] : memref<8x256xf32, #tpu.memory_space<vmem>>, vector<8x256xf32>
    tpu.vector_store %arg6[%c0_8, %c0_9], %22 {strides = array<i32>} : memref<8x256xf32, #tpu.memory_space<vmem>>, vector<8x256xf32>,
    return
  }
  func.func @transform_0(%arg0: i32, %arg1: i32) -> (i32, i32) {
    %c0_i32 = arith.constant 0 : i32
    %c0_i32_0 = arith.constant 0 : i32
    return %arg0, %c0_i32 : i32, i32
  }
  func.func @transform_1(%arg0: i32, %arg1: i32) -> (i32, i32) {
    %c0_i32 = arith.constant 0 : i32
    %c0_i32_0 = arith.constant 0 : i32
    %c0_i32_1 = arith.constant 0 : i32
    return %c0_i32, %c0_i32_0 : i32, i32
  }
  func.func @transform_2(%arg0: i32, %arg1: i32) -> (i32, i32) {
    %c0_i32 = arith.constant 0 : i32
    %c0_i32_0 = arith.constant 0 : i32
    %c0_i32_1 = arith.constant 0 : i32
    return %c0_i32, %c0_i32_0 : i32, i32
  }
  func.func @transform_3(%arg0: i32, %arg1: i32) -> (i32, i32) {
    %c0_i32 = arith.constant 0 : i32
    %c0_i32_0 = arith.constant 0 : i32
    %c0_i32_1 = arith.constant 0 : i32
    return %c0_i32, %c0_i32_0 : i32, i32
  }
  func.func @transform_4(%arg0: i32, %arg1: i32) -> (i32, i32) {
    %c0_i32 = arith.constant 0 : i32
    return %arg0, %arg1 : i32, i32
  }
}

</mosaic_0001>

<llo_original>
// kernel: tpu_custom_call.1
$region0: #{tpu_custom_call.1}
  #allocation0 [shape = 'u32[]', space=smem, size = 0x4, offset = 0x4, fixed_abs, tag = 'smem constant byte address 0x4 - core index']
  #allocation1 [shape = 'u32[144,128]{1,0:T(1,128)}', space=vmem, size = 0x12000, scoped, tag = 'internal scratch']
  #allocation2 [shape = 'f32[8,256]{1,0:T(8,128)}', space=vmem, size = 0x2000, scoped, tag = 'scratch operand']
  #allocation3 [shape = 'f32[256,8]{1,0:T(8,128)}', space=vmem, size = 0x20000, scoped, tag = 'scratch operand']
  #allocation4 [shape = 'bf16[8,256]{1,0:T(8,128)(2,1)}', space=vmem, size = 0x1000, scoped, tag = 'scratch operand']
  %s0 = inlined_call_operand.hbm [shape: f32[16,256], index: 0, kind: input, shape index: {}]
  %s1 = inlined_call_operand.hbm [shape: s32[2,256], index: 1, kind: input, shape index: {}]
  %s2 = inlined_call_operand.vmem [shape: f32[8,72], index: 2, kind: input, shape index: {}]
  %s3 = inlined_call_operand.vmem [shape: f32[8,1], index: 3, kind: input, shape index: {}]
  %s4 = inlined_call_operand.hbm [shape: f32[16,256], index: 4, kind: output, shape index: {}]
  %s5 = sld [smem:[#allocation0]]
  $region61: #{tpu_custom_call.1} parent=0
    _
  %s7 = ssub.s32 1, %s5
  %s8 = scalar_select 0, %s7, %s5
  $region1: #{tpu_custom_call.1} parent=0
    #allocation5 [shape = 'u8[16384]{0}', space=vmem, size = 0x4000, scoped, tag = 'input window, operand 0']
    #allocation6 [shape = 's32[2]{0}', space=sflag, size = 0x8, scoped, tag = 'scoped memory for tpu_custom_call.1']
    #allocation7 [shape = 's32[2]{0}', space=sflag, size = 0x8, scoped, tag = 'scoped memory for tpu_custom_call.1']
    #allocation8 [shape = 'u8[2048]{0}', space=vmem, size = 0x800, scoped, tag = 'input window, operand 1, single buffered']
    #allocation9 [shape = 's32[1]{0}', space=sflag, size = 0x4, scoped, tag = 'scoped memory for tpu_custom_call.1']
    #allocation10 [shape = 'u8[16384]{0}', space=vmem, size = 0x4000, scoped, tag = 'output window, operand 0']
    %9 = vsyncpa [#allocation6], 0
    %s10 = scalar_lea.sflag [#allocation6], 1
    %11 = vsyncpa %s10, 0
    %12 = vsyncpa [#allocation9], 0
    %13 = vsyncpa [#allocation7], 0
    %s14 = scalar_lea.sflag [#allocation7], 1
    %15 = vsyncpa %s14, 0
    loop: start=0, step=1, limit=4
    $region2: #{tpu_custom_call.1} parent=1 // loop_pre_header
      _
    $region3: #{tpu_custom_call.1} parent=1 // loop_header
      %s17 = sphi 0, %s21
      %p18 = scmp.ge.s32.totalorder %s17, 4
      %s24 = sphi 0, %s36
      %s25 = sphi 0, %s32
      %s26 = sphi 0, %s24
      %s27 = sphi 0, %s25
      %s28 = sphi 0, %s26
      %s29 = sphi 0, %s27
      %s39 = sphi 0, %s41
      %s42 = sphi 0, %s39
      %s43 = sphi 0, %s42
      %s59 = sphi 0, %s43
      %s63 = sphi 0, %s63
      %s65 = sphi 0, %s63
      %s66 = sphi 0, %s65
      %s80 = sphi 0, %s66
      %s84 = sphi 0, %s84
      %s86 = sphi 0, %s84
      %s87 = sphi 0, %s86
      %s101 = sphi 0, %s87
      %s105 = sphi 0, %s105
      %s107 = sphi 0, %s105
      %s108 = sphi 0, %s107
      %s122 = sphi 0, %s108
      %s130 = sphi 0, %s132
      %s133 = sphi 0, %s130
      %s134 = sphi 0, %s133
      %s150 = sphi 0, %s134
    $region4: #{tpu_custom_call.1} parent=1 // loop_header_branch
      %20 = sbr.rel (%p18) target = $region8
    $region5: #{tpu_custom_call.1} parent=1 // loop_body
      %s22 = ssub.s32 %s17, 1
      %s23 = ssub.s32 %s17, 2
      %s30 = sadd.s32 1, %s25
      %p31 = scmp.ge.s32.totalorder %s30, 1
      %s32 = scalar_select %p31, 0, %s30
      %s33 = sadd.s32 1, %s24
      %s34 = scalar_select %p31, %s33, %s24
      %p35 = scmp.ge.s32.totalorder %s34, 2
      %s36 = scalar_select %p35, 0, %s34
      %s37 = ssub.s32 %s24, %s36
      %p38 = scmp.eq.s32.totalorder %s37, 0
      %s40 = sadd.s32 %s39, 1
      %s41 = scalar_select %p38, %s39, %s40
      %p44 = pneg %p38
      %p45 = scmp.eq.s32.totalorder %s17, 1
      %p46 = por %p44, %p45
      %p47 = scmp.ne.s32.totalorder %s39, %s42
      %p48 = scmp.eq.s32.totalorder %s17, 0
      %p49 = por %p47, %p48
      %p50 = scmp.ne.s32.totalorder %s39, %s42
      %p51 = scmp.eq.s32.totalorder %s22, 1
      %p52 = por %p50, %p51
      %p53 = scmp.ne.s32.totalorder %s42, %s43
      %p54 = scmp.eq.s32.totalorder %s22, 0
      %p55 = por %p53, %p54
      %p56 = scmp.ne.s32.totalorder %s42, %s43
      %p57 = scmp.eq.s32.totalorder %s23, 1
      %p58 = por %p56, %p57
      %p60 = scmp.ne.s32.totalorder %s43, %s59
      %p61 = scmp.eq.s32.totalorder %s23, 0
      %p62 = por %p60, %p61
      %s64 = sadd.s32 %s63, 1
      %p67 = scmp.eq.s32.totalorder %s17, 1
      %p68 = scmp.ne.s32.totalorder %s63, %s65
      %p69 = scmp.eq.s32.totalorder %s17, 0
      %p70 = por %p68, %p69
      %p71 = scmp.ne.s32.totalorder %s63, %s65
      %p72 = scmp.eq.s32.totalorder %s22, 1
      %p73 = por %p71, %p72
      %p74 = scmp.ne.s32.totalorder %s65, %s66
      %p75 = scmp.eq.s32.totalorder %s22, 0
      %p76 = por %p74, %p75
      %p77 = scmp.ne.s32.totalorder %s65, %s66
      %p78 = scmp.eq.s32.totalorder %s23, 1
      %p79 = por %p77, %p78
      %p81 = scmp.ne.s32.totalorder %s66, %s80
      %p82 = scmp.eq.s32.totalorder %s23, 0
      %p83 = por %p81, %p82
      %s85 = sadd.s32 %s84, 1
      %p88 = scmp.eq.s32.totalorder %s17, 1
      %p89 = scmp.ne.s32.totalorder %s84, %s86
      %p90 = scmp.eq.s32.totalorder %s17, 0
      %p91 = por %p89, %p90
      %p92 = scmp.ne.s32.totalorder %s84, %s86
      %p93 = scmp.eq.s32.totalorder %s22, 1
      %p94 = por %p92, %p93
      %p95 = scmp.ne.s32.totalorder %s86, %s87
      %p96 = scmp.eq.s32.totalorder %s22, 0
      %p97 = por %p95, %p96
      %p98 = scmp.ne.s32.totalorder %s86, %s87
      %p99 = scmp.eq.s32.totalorder %s23, 1
      %p100 = por %p98, %p99
      %p102 = scmp.ne.s32.totalorder %s87, %s101
      %p103 = scmp.eq.s32.totalorder %s23, 0
      %p104 = por %p102, %p103
      %s106 = sadd.s32 %s105, 1
      %p109 = scmp.eq.s32.totalorder %s17, 1
      %p110 = scmp.ne.s32.totalorder %s105, %s107
      %p111 = scmp.eq.s32.totalorder %s17, 0
      %p112 = por %p110, %p111
      %p113 = scmp.ne.s32.totalorder %s105, %s107
      %p114 = scmp.eq.s32.totalorder %s22, 1
      %p115 = por %p113, %p114
      %p116 = scmp.ne.s32.totalorder %s107, %s108
      %p117 = scmp.eq.s32.totalorder %s22, 0
      %p118 = por %p116, %p117
      %p119 = scmp.ne.s32.totalorder %s107, %s108
      %p120 = scmp.eq.s32.totalorder %s23, 1
      %p121 = por %p119, %p120
      %p123 = scmp.ne.s32.totalorder %s108, %s122
      %p124 = scmp.eq.s32.totalorder %s23, 0
      %p125 = por %p123, %p124
      %s126 = ssub.s32 %s24, %s36
      %s127 = ssub.s32 %s25, %s32
      %s128 = sor.u32 %s126, %s127
      %p129 = scmp.eq.s32.totalorder %s128, 0
      %s131 = sadd.s32 %s130, 1
      %s132 = scalar_select %p129, %s130, %s131
      %p135 = pneg %p129
      %p136 = scmp.eq.s32.totalorder %s17, 1
      %p137 = por %p135, %p136
      %p138 = scmp.ne.s32.totalorder %s130, %s133
      %p139 = scmp.eq.s32.totalorder %s17, 0
      %p140 = por %p138, %p139
      %p141 = scmp.ne.s32.totalorder %s130, %s133
      %p142 = scmp.eq.s32.totalorder %s22, 1
      %p143 = por %p141, %p142
      %p144 = scmp.ne.s32.totalorder %s133, %s134
      %p145 = scmp.eq.s32.totalorder %s22, 0
      %p146 = por %p144, %p145
      %p147 = scmp.ne.s32.totalorder %s133, %s134
      %p148 = scmp.eq.s32.totalorder %s23, 1
      %p149 = por %p147, %p148
      %p151 = scmp.ne.s32.totalorder %s134, %s150
      %p152 = scmp.eq.s32.totalorder %s23, 0
      %p153 = por %p151, %p152
      %p154 = scmp.le.s32.totalorder 1, %s17
      %p155 = scmp.lt.s32.totalorder %s17, 3
      %p156 = pnand %p154, %p155
      %p157 = pneg %p156
      // Predicated region
      $region9: #{tpu_custom_call.1} parent=5 // pred_check
        _
      $region10: #{tpu_custom_call.1} parent=5 // pred_check_branch
        %159 = sbr.rel (%p156) target = $region12
      $region11: #{tpu_custom_call.1} parent=5 // pred_region
        %s160 = ssub.s32 %s17, 1
        // Predicated region
        $region13: #{tpu_custom_call.1} parent=11 // pred_check
          %p161 = pneg %p76
        $region14: #{tpu_custom_call.1} parent=11 // pred_check_branch
          %163 = sbr.rel (%p161) target = $region16
        $region15: #{tpu_custom_call.1} parent=11 // pred_region
          %s165 = ssub.s32 64, 64
          %166 = vsyncadd [#allocation9], %s165
          %s168 = sshll.u32 [#allocation8], 4
          %s169 = int_to_ptr.vmem [resolvable:$true] %s168
          %171 = dma.hbm_to_vmem [thread:$0]  %s1, 64, %s169, [#allocation9]
        $region16: #{tpu_custom_call.1} parent=11 // pred_fallthru
          _
        // Predicated region
        $region17: #{tpu_custom_call.1} parent=11 // pred_check
          %p172 = pneg %p97
        $region18: #{tpu_custom_call.1} parent=11 // pred_check_branch
          %174 = sbr.rel (%p172) target = $region20
        $region19: #{tpu_custom_call.1} parent=11 // pred_region
          _
        $region20: #{tpu_custom_call.1} parent=11 // pred_fallthru
          _
        // Predicated region
        $region21: #{tpu_custom_call.1} parent=11 // pred_check
          %p175 = pneg %p118
        $region22: #{tpu_custom_call.1} parent=11 // pred_check_branch
          %177 = sbr.rel (%p175) target = $region24
        $region23: #{tpu_custom_call.1} parent=11 // pred_region
          _
        $region24: #{tpu_custom_call.1} parent=11 // pred_fallthru
          _
      $region12: #{tpu_custom_call.1} parent=5 // pred_fallthru
        _
      %p178 = scmp.lt.s32.totalorder %s17, 2
      // Predicated region
      $region25: #{tpu_custom_call.1} parent=5 // pred_check
        %p179 = pneg %p178
      $region26: #{tpu_custom_call.1} parent=5 // pred_check_branch
        %181 = sbr.rel (%p179) target = $region28
      $region27: #{tpu_custom_call.1} parent=5 // pred_region
        // Predicated region
        $region29: #{tpu_custom_call.1} parent=27 // pred_check
          %p182 = pneg %p49
        $region30: #{tpu_custom_call.1} parent=27 // pred_check_branch
          %184 = sbr.rel (%p182) target = $region32
        $region31: #{tpu_custom_call.1} parent=27 // pred_region
          %s185 = sand.u32 %s39, 1
          %s186 = scalar_lea.sflag [#allocation6], %s185
          %s187 = sand.u32 %s39, 1
          %s188 = smul.addr %s187, 16
          %s189 = scalar_lea.vmem [#allocation5], %s188
          %s191 = ssub.s32 256, 256
          %192 = vsyncadd %s186, %s191
          %s193 = smul.addr %s24, 2
          %s194 = smul.addr %s193, 128
          %s195 = scalar_lea.hbm %s0, %s194
          %s197 = sshll.u32 %s189, 4
          %s198 = int_to_ptr.vmem [resolvable:$true] %s197
          %200 = dma.hbm_to_vmem [thread:$0]  %s195, 256, %s198, %s186
        $region32: #{tpu_custom_call.1} parent=27 // pred_fallthru
          _
      $region28: #{tpu_custom_call.1} parent=5 // pred_fallthru
        _
      %p201 = scmp.le.s32.totalorder 1, %s17
      %p202 = scmp.lt.s32.totalorder %s17, 3
      %p203 = pnand %p201, %p202
      %p204 = pneg %p203
      // Predicated region
      $region33: #{tpu_custom_call.1} parent=5 // pred_check
        _
      $region34: #{tpu_custom_call.1} parent=5 // pred_check_branch
        %206 = sbr.rel (%p203) target = $region36
      $region35: #{tpu_custom_call.1} parent=5 // pred_region
        %s207 = ssub.s32 %s17, 1
        %s208 = sand.u32 %s42, 1
        %s209 = scalar_lea.sflag [#allocation6], %s208
        %s210 = sand.u32 %s42, 1
        %s211 = smul.addr %s210, 16
        %s212 = scalar_lea.vmem [#allocation5], %s211
        // Predicated region
        $region37: #{tpu_custom_call.1} parent=35 // pred_check
          %p213 = pneg %p55
        $region38: #{tpu_custom_call.1} parent=35 // pred_check_branch
          %215 = sbr.rel (%p213) target = $region40
        $region39: #{tpu_custom_call.1} parent=35 // pred_region
          %216 = dma.done %s209, 256
        $region40: #{tpu_custom_call.1} parent=35 // pred_fallthru
          _
        // Predicated region
        $region41: #{tpu_custom_call.1} parent=35 // pred_check
          %p217 = pneg %p76
        $region42: #{tpu_custom_call.1} parent=35 // pred_check_branch
          %219 = sbr.rel (%p217) target = $region44
        $region43: #{tpu_custom_call.1} parent=35 // pred_region
          %220 = dma.done [#allocation9], 64
        $region44: #{tpu_custom_call.1} parent=35 // pred_fallthru
          _
        %s221 = sand.u32 %s42, 1
        %s222 = scalar_lea.sflag [#allocation6], %s221
        %s223 = sand.u32 %s42, 1
        %s224 = smul.addr %s223, 16
        %s225 = scalar_lea.vmem [#allocation5], %s224
        %p226 = pneg %p55
        %p227 = pneg %p52
        %p228 = pneg %p76
        %p229 = pneg %p73
        %p230 = pneg %p97
        %p231 = pneg %p94
        %p232 = pneg %p118
        %p233 = pneg %p115
        %p234 = pneg %p146
        %p235 = pneg %p143
        %s236 = sand.u32 %s133, 1
        %s237 = scalar_lea.sflag [#allocation7], %s236
        %s238 = sand.u32 %s133, 1
        %s239 = smul.addr %s238, 16
        %s240 = scalar_lea.vmem [#allocation10], %s239
        %s241 = smul.u32 2, %s27
        %p242 = scmp.eq.s32.totalorder %s27, 0
        // Predicated region
        $region45: #{tpu_custom_call.1} parent=35 // pred_check
          %p243 = pneg %p242
        $region46: #{tpu_custom_call.1} parent=35 // pred_check_branch
          %245 = sbr.rel (%p243) target = $region48
        $region47: #{tpu_custom_call.1} parent=35 // pred_region
          %v246 = vld [vmem:[%s212] sm:$0xff]
          %v247 = vld [vmem:[%s212 + $0x8] sm:$0xff]
          %v248 = vld [vmem:[#allocation8] ss:$2 sm:$0x3]
          %s249 = scalar_lea.vmem [#allocation8], 1
          %v250 = vld [vmem:[%s249] ss:$2 sm:$0x3]
          %252 = vrot.lane.b32.xlu0 %v247, 17
          %v253 = vpop.permute.xlu0 %252
          %256 = vrot.lane.b32.xlu0 %v246, 17
          %v257 = vpop.permute.xlu0 %256
          %vm258 = vcmask 138240
          %v259 = vsel %vm258, %v257, %v253
          %v262 = vsel %vm258, %v253, %v257
          %v263 = vadd.s32 %v248, 4294967295
          %vm264 = vcmp.ge.s32.totalorder %v263, 0
          %vm265 = vcmp.lt.s32.totalorder %v263, 16
          %vm266 = vmand %vm264, %vm265
          %v267 = vadd.s32 %v250, 4294967295
          %vm268 = vcmp.ge.s32.totalorder %v267, 0
          %vm269 = vmand %vm266, %vm268
          %vm270 = vcmp.lt.s32.totalorder %v267, 16
          %vm271 = vmand %vm269, %vm270
          %v272 = vsel %vm271, 1, 0
          %v273 = vcvt.s32.f32 %v272
          %v275 = vlaneseq
          %v276 = vshrl.u32 %v275, 7
          %v277 = vsub.s32 0, %v276
          %v278 = vrot.slane %v273, %v277
          %v279 = vlaneseq
          %v280 = vshrl.u32 %v279, 7
          %v281 = vsub.s32 1, %v280
          %v282 = vrot.slane %v273, %v281
          %v285 = vmul.f32 %v262, %v278
          %v286 = vmul.f32 %v259, %v282
          %287 = vrot.lane.b32.xlu0 %v247, 16
          %v288 = vpop.permute.xlu0 %287
          %290 = vrot.lane.b32.xlu0 %v246, 16
          %v291 = vpop.permute.xlu0 %290
          %vm292 = vcmask 130048
          %v293 = vsel %vm292, %v291, %v288
          %v296 = vsel %vm292, %v288, %v291
          %vm297 = vcmp.ge.s32.totalorder %v250, 0
          %vm298 = vmand %vm266, %vm297
          %vm299 = vcmp.lt.s32.totalorder %v250, 16
          %vm300 = vmand %vm298, %vm299
          %v301 = vsel %vm300, 1, 0
          %v302 = vcvt.s32.f32 %v301
          %v304 = vlaneseq
          %v305 = vshrl.u32 %v304, 7
          %v306 = vsub.s32 0, %v305
          %v307 = vrot.slane %v302, %v306
          %v308 = vlaneseq
          %v309 = vshrl.u32 %v308, 7
          %v310 = vsub.s32 1, %v309
          %v311 = vrot.slane %v302, %v310
          %v314 = vmul.f32 %v296, %v307
          %v315 = vmul.f32 %v293, %v311
          %316 = vrot.lane.b32.xlu0 %v247, 15
          %v317 = vpop.permute.xlu0 %316
          %319 = vrot.lane.b32.xlu0 %v246, 15
          %v320 = vpop.permute.xlu0 %319
          %vm321 = vcmask 121856
          %v322 = vsel %vm321, %v320, %v317
          %v325 = vsel %vm321, %v317, %v320
          %v326 = vadd.s32 %v250, 1
          %vm327 = vcmp.ge.s32.totalorder %v326, 0
          %vm328 = vmand %vm266, %vm327
          %vm329 = vcmp.lt.s32.totalorder %v326, 16
          %vm330 = vmand %vm328, %vm329
          %v331 = vsel %vm330, 1, 0
          %v332 = vcvt.s32.f32 %v331
          %v334 = vlaneseq
          %v335 = vshrl.u32 %v334, 7
          %v336 = vsub.s32 0, %v335
          %v337 = vrot.slane %v332, %v336
          %v338 = vlaneseq
          %v339 = vshrl.u32 %v338, 7
          %v340 = vsub.s32 1, %v339
          %v341 = vrot.slane %v332, %v340
          %v344 = vmul.f32 %v325, %v337
          %v345 = vmul.f32 %v322, %v341
          %346 = vrot.lane.b32.xlu0 %v247, 1
          %v347 = vpop.permute.xlu0 %346
          %349 = vrot.lane.b32.xlu0 %v246, 1
          %v350 = vpop.permute.xlu0 %349
          %vm351 = vcmask 7168
          %v352 = vsel %vm351, %v350, %v347
          %v355 = vsel %vm351, %v347, %v350
          %vm356 = vcmp.ge.s32.totalorder %v248, 0
          %vm357 = vcmp.lt.s32.totalorder %v248, 16
          %vm358 = vmand %vm356, %vm357
          %vm359 = vmand %vm358, %vm268
          %vm360 = vmand %vm359, %vm270
          %v361 = vsel %vm360, 1, 0
          %v362 = vcvt.s32.f32 %v361
          %v364 = vlaneseq
          %v365 = vshrl.u32 %v364, 7
          %v366 = vsub.s32 0, %v365
          %v367 = vrot.slane %v362, %v366
          %v368 = vlaneseq
          %v369 = vshrl.u32 %v368, 7
          %v370 = vsub.s32 1, %v369
          %v371 = vrot.slane %v362, %v370
          %v374 = vmul.f32 %v355, %v367
          %v375 = vmul.f32 %v352, %v371
          %vm376 = vmand %vm358, %vm297
          %vm377 = vmand %vm376, %vm299
          %v378 = vsel %vm377, 1, 0
          %v379 = vcvt.s32.f32 %v378
          %v381 = vlaneseq
          %v382 = vshrl.u32 %v381, 7
          %v383 = vsub.s32 0, %v382
          %v384 = vrot.slane %v379, %v383
          %v385 = vlaneseq
          %v386 = vshrl.u32 %v385, 7
          %v387 = vsub.s32 1, %v386
          %v388 = vrot.slane %v379, %v387
          %v391 = vmul.f32 %v246, %v384
          %v392 = vmul.f32 %v247, %v388
          %393 = vrot.lane.b32.xlu0 %v246, 127
          %v394 = vpop.permute.xlu0 %393
          %395 = vrot.lane.b32.xlu0 %v247, 127
          %v396 = vpop.permute.xlu0 %395
          %vm397 = vcmask 1039360
          %v398 = vsel %vm397, %v394, %v396
          %v402 = vsel %vm397, %v396, %v394
          %vm403 = vmand %vm358, %vm327
          %vm404 = vmand %vm403, %vm329
          %v405 = vsel %vm404, 1, 0
          %v406 = vcvt.s32.f32 %v405
          %v408 = vlaneseq
          %v409 = vshrl.u32 %v408, 7
          %v410 = vsub.s32 0, %v409
          %v411 = vrot.slane %v406, %v410
          %v412 = vlaneseq
          %v413 = vshrl.u32 %v412, 7
          %v414 = vsub.s32 1, %v413
          %v415 = vrot.slane %v406, %v414
          %v418 = vmul.f32 %v398, %v411
          %v419 = vmul.f32 %v402, %v415
          %420 = vrot.lane.b32.xlu0 %v246, 113
          %v421 = vpop.permute.xlu0 %420
          %422 = vrot.lane.b32.xlu0 %v247, 113
          %v423 = vpop.permute.xlu0 %422
          %vm424 = vcmask 924672
          %v425 = vsel %vm424, %v421, %v423
          %v429 = vsel %vm424, %v423, %v421
          %v430 = vadd.s32 %v248, 1
          %vm431 = vcmp.ge.s32.totalorder %v430, 0
          %vm432 = vcmp.lt.s32.totalorder %v430, 16
          %vm433 = vmand %vm431, %vm432
          %vm434 = vmand %vm433, %vm268
          %vm435 = vmand %vm434, %vm270
          %v436 = vsel %vm435, 1, 0
          %v437 = vcvt.s32.f32 %v436
          %v439 = vlaneseq
          %v440 = vshrl.u32 %v439, 7
          %v441 = vsub.s32 0, %v440
          %v442 = vrot.slane %v437, %v441
          %v443 = vlaneseq
          %v444 = vshrl.u32 %v443, 7
          %v445 = vsub.s32 1, %v444
          %v446 = vrot.slane %v437, %v445
          %v449 = vmul.f32 %v425, %v442
          %v450 = vmul.f32 %v429, %v446
          %451 = vrot.lane.b32.xlu0 %v246, 112
          %v452 = vpop.permute.xlu0 %451
          %453 = vrot.lane.b32.xlu0 %v247, 112
          %v454 = vpop.permute.xlu0 %453
          %vm455 = vcmask 916480
          %v456 = vsel %vm455, %v452, %v454
          %v460 = vsel %vm455, %v454, %v452
          %vm461 = vmand %vm433, %vm297
          %vm462 = vmand %vm461, %vm299
          %v463 = vsel %vm462, 1, 0
          %v464 = vcvt.s32.f32 %v463
          %v466 = vlaneseq
          %v467 = vshrl.u32 %v466, 7
          %v468 = vsub.s32 0, %v467
          %v469 = vrot.slane %v464, %v468
          %v470 = vlaneseq
          %v471 = vshrl.u32 %v470, 7
          %v472 = vsub.s32 1, %v471
          %v473 = vrot.slane %v464, %v472
          %v476 = vmul.f32 %v456, %v469
          %v477 = vmul.f32 %v460, %v473
          %478 = vrot.lane.b32.xlu0 %v246, 111
          %v479 = vpop.permute.xlu0 %478
          %480 = vrot.lane.b32.xlu0 %v247, 111
          %v481 = vpop.permute.xlu0 %480
          %vm482 = vcmask 908288
          %v483 = vsel %vm482, %v479, %v481
          %v487 = vsel %vm482, %v481, %v479
          %vm488 = vmand %vm433, %vm327
          %vm489 = vmand %vm488, %vm329
          %v490 = vsel %vm489, 1, 0
          %v491 = vcvt.s32.f32 %v490
          %v493 = vlaneseq
          %v494 = vshrl.u32 %v493, 7
          %v495 = vsub.s32 0, %v494
          %v496 = vrot.slane %v491, %v495
          %v497 = vlaneseq
          %v498 = vshrl.u32 %v497, 7
          %v499 = vsub.s32 1, %v498
          %v500 = vrot.slane %v491, %v499
          %v503 = vmul.f32 %v483, %v496
          %v504 = vmul.f32 %v487, %v500
          %v505 = vld [vmem:[%s2] sm:$0xff]
          %v506 = vld [vmem:[%s3] sm:$0xff]
          %508 = vset.pattern.permute.xlu0 0
          %509 = vperm.xlu0 %508, %v506
          %v510 = vpop.permute.xlu0 %509
          %vm512 = vcmask 588800
          %v514 = vsel %vm512, %v505, 0
          %516 = vmatprep.subr.mxu0 %v286
          %517 = vmatpush1.msra.mxu0 %v285
          %518 = vmatprep.subr.mxu0 %v315
          %519 = vmatpush1.msra.mxu0 %v314
          %520 = vmatprep.subr.mxu0 %v345
          %521 = vmatpush1.msra.mxu0 %v344
          %522 = vmatprep.subr.mxu0 %v375
          %523 = vmatpush1.msra.mxu0 %v374
          %524 = vmatprep.subr.mxu0 %v392
          %525 = vmatpush1.msra.mxu0 %v391
          %526 = vmatprep.subr.mxu0 %v419
          %527 = vmatpush1.msra.mxu0 %v418
          %528 = vmatprep.subr.mxu0 %v450
          %529 = vmatpush1.msra.mxu0 %v449
          %530 = vmatprep.subr.mxu0 %v477
          %531 = vmatpush1.msra.mxu0 %v476
          %532 = vmatprep.subr.mxu0 %v504
          %533 = vmatpush1.msra.mxu0 %v503
          %534 = vmatprep.subr.mxu0 0.0
          %535 = vmatpush1.msra.mxu0 0.0
          %536 = vmatprep.subr.mxu0 0.0
          %537 = vmatpush1.msra.mxu0 0.0
          %538 = vmatprep.subr.mxu0 0.0
          %539 = vmatpush1.msra.mxu0 0.0
          %540 = vmatprep.subr.mxu0 0.0
          %541 = vmatpush1.msra.mxu0 0.0
          %542 = vmatprep.subr.mxu0 0.0
          %543 = vmatpush1.msra.mxu0 0.0
          %544 = vmatprep.subr.mxu0 0.0
          %545 = vmatpush1.msra.mxu0 0.0
          %546 = vmatprep.subr.mxu0 0.0
          %547 = vmatpush1.msra.mxu0 0.0
          %548 = vmatprep.subr.mxu0 0.0
          %549 = vmatpush1.msra.mxu0 0.0
          %550 = vmatprep.subr.mxu0 0.0
          %551 = vmatpush1.msra.mxu0 0.0
          %552 = vmatprep.subr.mxu0 0.0
          %553 = vmatpush1.msra.mxu0 0.0
          %554 = vmatprep.subr.mxu0 0.0
          %555 = vmatpush1.msra.mxu0 0.0
          %556 = vmatprep.subr.mxu0 0.0
          %557 = vmatpush1.msra.mxu0 0.0
          %558 = vmatprep.subr.mxu0 0.0
          %559 = vmatpush1.msra.mxu0 0.0
          %560 = vmatprep.subr.mxu0 0.0
          %561 = vmatpush1.msra.mxu0 0.0
          %562 = vmatprep.subr.mxu0 0.0
          %563 = vmatpush1.msra.mxu0 0.0
          %564 = vmatprep.subr.mxu0 0.0
          %565 = vmatpush1.msra.mxu0 0.0
          %566 = vmatprep.subr.mxu0 0.0
          %567 = vmatpush1.msra.mxu0 0.0
          %568 = vmatprep.subr.mxu0 0.0
          %569 = vmatpush1.msra.mxu0 0.0
          %570 = vmatprep.subr.mxu0 0.0
          %571 = vmatpush1.msra.mxu0 0.0
          %572 = vmatprep.subr.mxu0 0.0
          %573 = vmatpush1.msra.mxu0 0.0
          %574 = vmatprep.subr.mxu0 0.0
          %575 = vmatpush1.msra.mxu0 0.0
          %576 = vmatprep.subr.mxu0 0.0
          %577 = vmatpush1.msra.mxu0 0.0
          %578 = vmatprep.subr.mxu0 0.0
          %579 = vmatpush1.msra.mxu0 0.0
          %580 = vmatprep.mubr.f32.mxu0 0.0
          %581 = vmatmul.mubr.f32.gmra.mrb[0].mxu0 %v514
          %v582 = vpop.f32.mrb[0].mxu0
          %v583 = vadd.f32 %v510, %v582
          %v584 = vpop.f32.mrb[0].mxu0
          %v585 = vadd.f32 %v510, %v584
          %586 = vdwg.mxu0
          %587 = vst [vmem:[#allocation2] sm:$0xff] %v583
          %588 = vst [vmem:[#allocation2 + $0x8] sm:$0xff] %v585
          %589 = vxpose.xlu0.b32.start [1/16] %v583, 128
          %590 = vxpose.xlu0.b32.cont [2/16] 0.0, 128
          %591 = vxpose.xlu0.b32.cont [3/16] 0.0, 128
          %592 = vxpose.xlu0.b32.cont [4/16] 0.0, 128
          %593 = vxpose.xlu0.b32.cont [5/16] 0.0, 128
          %594 = vxpose.xlu0.b32.cont [6/16] 0.0, 128
          %595 = vxpose.xlu0.b32.cont [7/16] 0.0, 128
          %596 = vxpose.xlu0.b32.cont [8/16] 0.0, 128
          %597 = vxpose.xlu0.b32.cont [9/16] 0.0, 128
          %598 = vxpose.xlu0.b32.cont [10/16] 0.0, 128
          %599 = vxpose.xlu0.b32.cont [11/16] 0.0, 128
          %600 = vxpose.xlu0.b32.cont [12/16] 0.0, 128
          %601 = vxpose.xlu0.b32.cont [13/16] 0.0, 128
          %602 = vxpose.xlu0.b32.cont [14/16] 0.0, 128
          %603 = vxpose.xlu0.b32.cont [15/16] 0.0, 128
          %604 = vxpose.xlu0.b32.end [16/16] 0.0, 128
          %v605 = vpop.trf.xlu0
          %v606 = vpop.trf.xlu0
          %v607 = vpop.trf.xlu0
          %v608 = vpop.trf.xlu0
          %v609 = vpop.trf.xlu0
          %v610 = vpop.trf.xlu0
          %v611 = vpop.trf.xlu0
          %v612 = vpop.trf.xlu0
          %v613 = vpop.trf.xlu0
          %v614 = vpop.trf.xlu0
          %v615 = vpop.trf.xlu0
          %v616 = vpop.trf.xlu0
          %v617 = vpop.trf.xlu0
          %v618 = vpop.trf.xlu0
          %v619 = vpop.trf.xlu0
          %v620 = vpop.trf.xlu0
          %621 = vxpose.xlu0.b32.start [1/16] %v585, 128
          %622 = vxpose.xlu0.b32.cont [2/16] 0.0, 128
          %623 = vxpose.xlu0.b32.cont [3/16] 0.0, 128
          %624 = vxpose.xlu0.b32.cont [4/16] 0.0, 128
          %625 = vxpose.xlu0.b32.cont [5/16] 0.0, 128
          %626 = vxpose.xlu0.b32.cont [6/16] 0.0, 128
          %627 = vxpose.xlu0.b32.cont [7/16] 0.0, 128
          %628 = vxpose.xlu0.b32.cont [8/16] 0.0, 128
          %629 = vxpose.xlu0.b32.cont [9/16] 0.0, 128
          %630 = vxpose.xlu0.b32.cont [10/16] 0.0, 128
          %631 = vxpose.xlu0.b32.cont [11/16] 0.0, 128
          %632 = vxpose.xlu0.b32.cont [12/16] 0.0, 128
          %633 = vxpose.xlu0.b32.cont [13/16] 0.0, 128
          %634 = vxpose.xlu0.b32.cont [14/16] 0.0, 128
          %635 = vxpose.xlu0.b32.cont [15/16] 0.0, 128
          %636 = vxpose.xlu0.b32.end [16/16] 0.0, 128
          %v637 = vpop.trf.xlu0
          %v638 = vpop.trf.xlu0
          %v639 = vpop.trf.xlu0
          %v640 = vpop.trf.xlu0
          %v641 = vpop.trf.xlu0
          %v642 = vpop.trf.xlu0
          %v643 = vpop.trf.xlu0
          %v644 = vpop.trf.xlu0
          %v645 = vpop.trf.xlu0
          %v646 = vpop.trf.xlu0
          %v647 = vpop.trf.xlu0
          %v648 = vpop.trf.xlu0
          %v649 = vpop.trf.xlu0
          %v650 = vpop.trf.xlu0
          %v651 = vpop.trf.xlu0
          %v652 = vpop.trf.xlu0
          %vm653 = vcmask 64512
          %654 = vst.msk [vmem:[#allocation3] sm:$0xff] %vm653, %v605
          %655 = vst.msk [vmem:[#allocation3 + $0x8] sm:$0xff] %vm653, %v606
          %656 = vst.msk [vmem:[#allocation3 + $0x10] sm:$0xff] %vm653, %v607
          %657 = vst.msk [vmem:[#allocation3 + $0x18] sm:$0xff] %vm653, %v608
          %658 = vst.msk [vmem:[#allocation3 + $0x20] sm:$0xff] %vm653, %v609
          %659 = vst.msk [vmem:[#allocation3 + $0x28] sm:$0xff] %vm653, %v610
          %660 = vst.msk [vmem:[#allocation3 + $0x30] sm:$0xff] %vm653, %v611
          %661 = vst.msk [vmem:[#allocation3 + $0x38] sm:$0xff] %vm653, %v612
          %662 = vst.msk [vmem:[#allocation3 + $0x40] sm:$0xff] %vm653, %v613
          %663 = vst.msk [vmem:[#allocation3 + $0x48] sm:$0xff] %vm653, %v614
          %664 = vst.msk [vmem:[#allocation3 + $0x50] sm:$0xff] %vm653, %v615
          %665 = vst.msk [vmem:[#allocation3 + $0x58] sm:$0xff] %vm653, %v616
          %666 = vst.msk [vmem:[#allocation3 + $0x60] sm:$0xff] %vm653, %v617
          %667 = vst.msk [vmem:[#allocation3 + $0x68] sm:$0xff] %vm653, %v618
          %668 = vst.msk [vmem:[#allocation3 + $0x70] sm:$0xff] %vm653, %v619
          %669 = vst.msk [vmem:[#allocation3 + $0x78] sm:$0xff] %vm653, %v620
          %670 = vst.msk [vmem:[#allocation3 + $0x80] sm:$0xff] %vm653, %v637
          %671 = vst.msk [vmem:[#allocation3 + $0x88] sm:$0xff] %vm653, %v638
          %672 = vst.msk [vmem:[#allocation3 + $0x90] sm:$0xff] %vm653, %v639
          %673 = vst.msk [vmem:[#allocation3 + $0x98] sm:$0xff] %vm653, %v640
          %674 = vst.msk [vmem:[#allocation3 + $0xa0] sm:$0xff] %vm653, %v641
          %675 = vst.msk [vmem:[#allocation3 + $0xa8] sm:$0xff] %vm653, %v642
          %676 = vst.msk [vmem:[#allocation3 + $0xb0] sm:$0xff] %vm653, %v643
          %677 = vst.msk [vmem:[#allocation3 + $0xb8] sm:$0xff] %vm653, %v644
          %678 = vst.msk [vmem:[#allocation3 + $0xc0] sm:$0xff] %vm653, %v645
          %679 = vst.msk [vmem:[#allocation3 + $0xc8] sm:$0xff] %vm653, %v646
          %680 = vst.msk [vmem:[#allocation3 + $0xd0] sm:$0xff] %vm653, %v647
          %681 = vst.msk [vmem:[#allocation3 + $0xd8] sm:$0xff] %vm653, %v648
          %682 = vst.msk [vmem:[#allocation3 + $0xe0] sm:$0xff] %vm653, %v649
          %683 = vst.msk [vmem:[#allocation3 + $0xe8] sm:$0xff] %vm653, %v650
          %684 = vst.msk [vmem:[#allocation3 + $0xf0] sm:$0xff] %vm653, %v651
          %685 = vst.msk [vmem:[#allocation3 + $0xf8] sm:$0xff] %vm653, %v652
          %v686 = vpack.c.bf16 %v583, %v583
          %v687 = vpack.c.bf16 %v585, %v585
          %v690 = vunpack.c.l.b16 %v686
          %v691 = vunpack.c.l.b16 %v687
          %v692 = vpack.c.b16 %v691, %v690
          %694 = vst [vmem:[#allocation4] sm:$0xff] %v692
        $region48: #{tpu_custom_call.1} parent=35 // pred_fallthru
          _
        %s695 = smul.u32 %s27, 256
        %s696 = sshra.s32 %s695, 7
        %s697 = sand.u32 %s695, 127
        %s698 = smul.addr %s696, 8
        %s699 = scalar_lea.vmem [#allocation2], %s698
        %v700 = vld [vmem:[%s699] sm:$0xff]
        %v701 = vld [vmem:[%s699 + $0x8] sm:$0xff]
        %v702 = vld [vmem:[#allocation3] sm:$0xff]
        %v703 = vld [vmem:[#allocation3 + $0x8] sm:$0xff]
        %v704 = vld [vmem:[#allocation3 + $0x10] sm:$0xff]
        %v705 = vld [vmem:[#allocation3 + $0x18] sm:$0xff]
        %v706 = vld [vmem:[#allocation3 + $0x20] sm:$0xff]
        %v707 = vld [vmem:[#allocation3 + $0x28] sm:$0xff]
        %v708 = vld [vmem:[#allocation3 + $0x30] sm:$0xff]
        %v709 = vld [vmem:[#allocation3 + $0x38] sm:$0xff]
        %v710 = vld [vmem:[#allocation3 + $0x40] sm:$0xff]
        %v711 = vld [vmem:[#allocation3 + $0x48] sm:$0xff]
        %v712 = vld [vmem:[#allocation3 + $0x50] sm:$0xff]
        %v713 = vld [vmem:[#allocation3 + $0x58] sm:$0xff]
        %v714 = vld [vmem:[#allocation3 + $0x60] sm:$0xff]
        %v715 = vld [vmem:[#allocation3 + $0x68] sm:$0xff]
        %v716 = vld [vmem:[#allocation3 + $0x70] sm:$0xff]
        %v717 = vld [vmem:[#allocation3 + $0x78] sm:$0xff]
        %v718 = vld [vmem:[#allocation3 + $0x80] sm:$0xff]
        %v719 = vld [vmem:[#allocation3 + $0x88] sm:$0xff]
        %v720 = vld [vmem:[#allocation3 + $0x90] sm:$0xff]
        %v721 = vld [vmem:[#allocation3 + $0x98] sm:$0xff]
        %v722 = vld [vmem:[#allocation3 + $0xa0] sm:$0xff]
        %v723 = vld [vmem:[#allocation3 + $0xa8] sm:$0xff]
        %v724 = vld [vmem:[#allocation3 + $0xb0] sm:$0xff]
        %v725 = vld [vmem:[#allocation3 + $0xb8] sm:$0xff]
        %v726 = vld [vmem:[#allocation3 + $0xc0] sm:$0xff]
        %v727 = vld [vmem:[#allocation3 + $0xc8] sm:$0xff]
        %v728 = vld [vmem:[#allocation3 + $0xd0] sm:$0xff]
        %v729 = vld [vmem:[#allocation3 + $0xd8] sm:$0xff]
        %v730 = vld [vmem:[#allocation3 + $0xe0] sm:$0xff]
        %v731 = vld [vmem:[#allocation3 + $0xe8] sm:$0xff]
        %v732 = vld [vmem:[#allocation3 + $0xf0] sm:$0xff]
        %v733 = vld [vmem:[#allocation3 + $0xf8] sm:$0xff]
        %vm734 = vcmask 64512
        %v736 = vsel %vm734, %v702, 0
        %v739 = vsel %vm734, %v703, 0
        %v742 = vsel %vm734, %v704, 0
        %v745 = vsel %vm734, %v705, 0
        %v748 = vsel %vm734, %v706, 0
        %v751 = vsel %vm734, %v707, 0
        %v754 = vsel %vm734, %v708, 0
        %v757 = vsel %vm734, %v709, 0
        %v760 = vsel %vm734, %v710, 0
        %v763 = vsel %vm734, %v711, 0
        %v766 = vsel %vm734, %v712, 0
        %v769 = vsel %vm734, %v713, 0
        %v772 = vsel %vm734, %v714, 0
        %v775 = vsel %vm734, %v715, 0
        %v778 = vsel %vm734, %v716, 0
        %v781 = vsel %vm734, %v717, 0
        %v784 = vsel %vm734, %v718, 0
        %v787 = vsel %vm734, %v719, 0
        %v790 = vsel %vm734, %v720, 0
        %v793 = vsel %vm734, %v721, 0
        %v796 = vsel %vm734, %v722, 0
        %v799 = vsel %vm734, %v723, 0
        %v802 = vsel %vm734, %v724, 0
        %v805 = vsel %vm734, %v725, 0
        %v808 = vsel %vm734, %v726, 0
        %v811 = vsel %vm734, %v727, 0
        %v814 = vsel %vm734, %v728, 0
        %v817 = vsel %vm734, %v729, 0
        %v820 = vsel %vm734, %v730, 0
        %v823 = vsel %vm734, %v731, 0
        %v826 = vsel %vm734, %v732, 0
        %v829 = vsel %vm734, %v733, 0
        %831 = vmatprep.subr.mxu0 %v701
        %832 = vmatpush1.msra.mxu0 %v700
        %833 = vmatprep.subr.mxu0 0.0
        %834 = vmatpush1.msra.mxu0 0.0
        %835 = vmatprep.subr.mxu0 0.0
        %836 = vmatpush1.msra.mxu0 0.0
        %837 = vmatprep.subr.mxu0 0.0
        %838 = vmatpush1.msra.mxu0 0.0
        %839 = vmatprep.subr.mxu0 0.0
        %840 = vmatpush1.msra.mxu0 0.0
        %841 = vmatprep.subr.mxu0 0.0
        %842 = vmatpush1.msra.mxu0 0.0
        %843 = vmatprep.subr.mxu0 0.0
        %844 = vmatpush1.msra.mxu0 0.0
        %845 = vmatprep.subr.mxu0 0.0
        %846 = vmatpush1.msra.mxu0 0.0
        %847 = vmatprep.subr.mxu0 0.0
        %848 = vmatpush1.msra.mxu0 0.0
        %849 = vmatprep.subr.mxu0 0.0
        %850 = vmatpush1.msra.mxu0 0.0
        %851 = vmatprep.subr.mxu0 0.0
        %852 = vmatpush1.msra.mxu0 0.0
        %853 = vmatprep.subr.mxu0 0.0
        %854 = vmatpush1.msra.mxu0 0.0
        %855 = vmatprep.subr.mxu0 0.0
        %856 = vmatpush1.msra.mxu0 0.0
        %857 = vmatprep.subr.mxu0 0.0
        %858 = vmatpush1.msra.mxu0 0.0
        %859 = vmatprep.subr.mxu0 0.0
        %860 = vmatpush1.msra.mxu0 0.0
        %861 = vmatprep.subr.mxu0 0.0
        %862 = vmatpush1.msra.mxu0 0.0
        %863 = vmatprep.subr.mxu0 0.0
        %864 = vmatpush1.msra.mxu0 0.0
        %865 = vmatprep.subr.mxu0 0.0
        %866 = vmatpush1.msra.mxu0 0.0
        %867 = vmatprep.subr.mxu0 0.0
        %868 = vmatpush1.msra.mxu0 0.0
        %869 = vmatprep.subr.mxu0 0.0
        %870 = vmatpush1.msra.mxu0 0.0
        %871 = vmatprep.subr.mxu0 0.0
        %872 = vmatpush1.msra.mxu0 0.0
        %873 = vmatprep.subr.mxu0 0.0
        %874 = vmatpush1.msra.mxu0 0.0
        %875 = vmatprep.subr.mxu0 0.0
        %876 = vmatpush1.msra.mxu0 0.0
        %877 = vmatprep.subr.mxu0 0.0
        %878 = vmatpush1.msra.mxu0 0.0
        %879 = vmatprep.subr.mxu0 0.0
        %880 = vmatpush1.msra.mxu0 0.0
        %881 = vmatprep.subr.mxu0 0.0
        %882 = vmatpush1.msra.mxu0 0.0
        %883 = vmatprep.subr.mxu0 0.0
        %884 = vmatpush1.msra.mxu0 0.0
        %885 = vmatprep.subr.mxu0 0.0
        %886 = vmatpush1.msra.mxu0 0.0
        %887 = vmatprep.subr.mxu0 0.0
        %888 = vmatpush1.msra.mxu0 0.0
        %889 = vmatprep.subr.mxu0 0.0
        %890 = vmatpush1.msra.mxu0 0.0
        %891 = vmatprep.subr.mxu0 0.0
        %892 = vmatpush1.msra.mxu0 0.0
        %893 = vmatprep.subr.mxu0 0.0
        %894 = vmatpush1.msra.mxu0 0.0
        %895 = vmatprep.mubr.f32.mxu0 0.0
        %896 = vmatmul.mubr.f32.gmra.mrb[0].mxu0 %v736
        %v897 = vpop.f32.mrb[0].mxu0
        %v898 = vadd.f32 0.0, %v897
        %v899 = vpop.f32.mrb[0].mxu0
        %v900 = vadd.f32 0.0, %v899
        %901 = vmatprep.mubr.f32.mxu0 0.0
        %902 = vmatmul.mubr.f32.gmra.mrb[0].mxu0 %v739
        %v903 = vpop.f32.mrb[0].mxu0
        %v904 = vadd.f32 0.0, %v903
        %v905 = vpop.f32.mrb[0].mxu0
        %v906 = vadd.f32 0.0, %v905
        %907 = vmatprep.mubr.f32.mxu0 0.0
        %908 = vmatmul.mubr.f32.gmra.mrb[0].mxu0 %v742
        %v909 = vpop.f32.mrb[0].mxu0
        %v910 = vadd.f32 0.0, %v909
        %v911 = vpop.f32.mrb[0].mxu0
        %v912 = vadd.f32 0.0, %v911
        %913 = vmatprep.mubr.f32.mxu0 0.0
        %914 = vmatmul.mubr.f32.gmra.mrb[0].mxu0 %v745
        %v915 = vpop.f32.mrb[0].mxu0
        %v916 = vadd.f32 0.0, %v915
        %v917 = vpop.f32.mrb[0].mxu0
        %v918 = vadd.f32 0.0, %v917
        %919 = vmatprep.mubr.f32.mxu0 0.0
        %920 = vmatmul.mubr.f32.gmra.mrb[0].mxu0 %v748
        %v921 = vpop.f32.mrb[0].mxu0
        %v922 = vadd.f32 0.0, %v921
        %v923 = vpop.f32.mrb[0].mxu0
        %v924 = vadd.f32 0.0, %v923
        %925 = vmatprep.mubr.f32.mxu0 0.0
        %926 = vmatmul.mubr.f32.gmra.mrb[0].mxu0 %v751
        %v927 = vpop.f32.mrb[0].mxu0
        %v928 = vadd.f32 0.0, %v927
        %v929 = vpop.f32.mrb[0].mxu0
        %v930 = vadd.f32 0.0, %v929
        %931 = vmatprep.mubr.f32.mxu0 0.0
        %932 = vmatmul.mubr.f32.gmra.mrb[0].mxu0 %v754
        %v933 = vpop.f32.mrb[0].mxu0
        %v934 = vadd.f32 0.0, %v933
        %v935 = vpop.f32.mrb[0].mxu0
        %v936 = vadd.f32 0.0, %v935
        %937 = vmatprep.mubr.f32.mxu0 0.0
        %938 = vmatmul.mubr.f32.gmra.mrb[0].mxu0 %v757
        %v939 = vpop.f32.mrb[0].mxu0
        %v940 = vadd.f32 0.0, %v939
        %v941 = vpop.f32.mrb[0].mxu0
        %v942 = vadd.f32 0.0, %v941
        %943 = vmatprep.mubr.f32.mxu0 0.0
        %944 = vmatmul.mubr.f32.gmra.mrb[0].mxu0 %v760
        %v945 = vpop.f32.mrb[0].mxu0
        %v946 = vadd.f32 0.0, %v945
        %v947 = vpop.f32.mrb[0].mxu0
        %v948 = vadd.f32 0.0, %v947
        %949 = vmatprep.mubr.f32.mxu0 0.0
        %950 = vmatmul.mubr.f32.gmra.mrb[0].mxu0 %v763
        %v951 = vpop.f32.mrb[0].mxu0
        %v952 = vadd.f32 0.0, %v951
        %v953 = vpop.f32.mrb[0].mxu0
        %v954 = vadd.f32 0.0, %v953
        %955 = vmatprep.mubr.f32.mxu0 0.0
        %956 = vmatmul.mubr.f32.gmra.mrb[0].mxu0 %v766
        %v957 = vpop.f32.mrb[0].mxu0
        %v958 = vadd.f32 0.0, %v957
        %v959 = vpop.f32.mrb[0].mxu0
        %v960 = vadd.f32 0.0, %v959
        %961 = vmatprep.mubr.f32.mxu0 0.0
        %962 = vmatmul.mubr.f32.gmra.mrb[0].mxu0 %v769
        %v963 = vpop.f32.mrb[0].mxu0
        %v964 = vadd.f32 0.0, %v963
        %v965 = vpop.f32.mrb[0].mxu0
        %v966 = vadd.f32 0.0, %v965
        %967 = vmatprep.mubr.f32.mxu0 0.0
        %968 = vmatmul.mubr.f32.gmra.mrb[0].mxu0 %v772
        %v969 = vpop.f32.mrb[0].mxu0
        %v970 = vadd.f32 0.0, %v969
        %v971 = vpop.f32.mrb[0].mxu0
        %v972 = vadd.f32 0.0, %v971
        %973 = vmatprep.mubr.f32.mxu0 0.0
        %974 = vmatmul.mubr.f32.gmra.mrb[0].mxu0 %v775
        %v975 = vpop.f32.mrb[0].mxu0
        %v976 = vadd.f32 0.0, %v975
        %v977 = vpop.f32.mrb[0].mxu0
        %v978 = vadd.f32 0.0, %v977
        %979 = vmatprep.mubr.f32.mxu0 0.0
        %980 = vmatmul.mubr.f32.gmra.mrb[0].mxu0 %v778
        %v981 = vpop.f32.mrb[0].mxu0
        %v982 = vadd.f32 0.0, %v981
        %v983 = vpop.f32.mrb[0].mxu0
        %v984 = vadd.f32 0.0, %v983
        %985 = vmatprep.mubr.f32.mxu0 0.0
        %986 = vmatmul.mubr.f32.gmra.mrb[0].mxu0 %v781
        %v987 = vpop.f32.mrb[0].mxu0
        %v988 = vadd.f32 0.0, %v987
        %v989 = vpop.f32.mrb[0].mxu0
        %v990 = vadd.f32 0.0, %v989
        %991 = vmatprep.mubr.f32.mxu0 0.0
        %992 = vmatmul.mubr.f32.gmra.mrb[0].mxu0 %v784
        %v993 = vpop.f32.mrb[0].mxu0
        %v994 = vadd.f32 0.0, %v993
        %v995 = vpop.f32.mrb[0].mxu0
        %v996 = vadd.f32 0.0, %v995
        %997 = vmatprep.mubr.f32.mxu0 0.0
        %998 = vmatmul.mubr.f32.gmra.mrb[0].mxu0 %v787
        %v999 = vpop.f32.mrb[0].mxu0
        %v1000 = vadd.f32 0.0, %v999
        %v1001 = vpop.f32.mrb[0].mxu0
        %v1002 = vadd.f32 0.0, %v1001
        %1003 = vmatprep.mubr.f32.mxu0 0.0
        %1004 = vmatmul.mubr.f32.gmra.mrb[0].mxu0 %v790
        %v1005 = vpop.f32.mrb[0].mxu0
        %v1006 = vadd.f32 0.0, %v1005
        %v1007 = vpop.f32.mrb[0].mxu0
        %v1008 = vadd.f32 0.0, %v1007
        %1009 = vmatprep.mubr.f32.mxu0 0.0
        %1010 = vmatmul.mubr.f32.gmra.mrb[0].mxu0 %v793
        %v1011 = vpop.f32.mrb[0].mxu0
        %v1012 = vadd.f32 0.0, %v1011
        %v1013 = vpop.f32.mrb[0].mxu0
        %v1014 = vadd.f32 0.0, %v1013
        %1015 = vmatprep.mubr.f32.mxu0 0.0
        %1016 = vmatmul.mubr.f32.gmra.mrb[0].mxu0 %v796
        %v1017 = vpop.f32.mrb[0].mxu0
        %v1018 = vadd.f32 0.0, %v1017
        %v1019 = vpop.f32.mrb[0].mxu0
        %v1020 = vadd.f32 0.0, %v1019
        %1021 = vmatprep.mubr.f32.mxu0 0.0
        %1022 = vmatmul.mubr.f32.gmra.mrb[0].mxu0 %v799
        %v1023 = vpop.f32.mrb[0].mxu0
        %v1024 = vadd.f32 0.0, %v1023
        %v1025 = vpop.f32.mrb[0].mxu0
        %v1026 = vadd.f32 0.0, %v1025
        %1027 = vmatprep.mubr.f32.mxu0 0.0
        %1028 = vmatmul.mubr.f32.gmra.mrb[0].mxu0 %v802
        %v1029 = vpop.f32.mrb[0].mxu0
        %v1030 = vadd.f32 0.0, %v1029
        %v1031 = vpop.f32.mrb[0].mxu0
        %v1032 = vadd.f32 0.0, %v1031
        %1033 = vmatprep.mubr.f32.mxu0 0.0
        %1034 = vmatmul.mubr.f32.gmra.mrb[0].mxu0 %v805
        %v1035 = vpop.f32.mrb[0].mxu0
        %v1036 = vadd.f32 0.0, %v1035
        %v1037 = vpop.f32.mrb[0].mxu0
        %v1038 = vadd.f32 0.0, %v1037
        %1039 = vmatprep.mubr.f32.mxu0 0.0
        %1040 = vmatmul.mubr.f32.gmra.mrb[0].mxu0 %v808
        %v1041 = vpop.f32.mrb[0].mxu0
        %v1042 = vadd.f32 0.0, %v1041
        %v1043 = vpop.f32.mrb[0].mxu0
        %v1044 = vadd.f32 0.0, %v1043
        %1045 = vmatprep.mubr.f32.mxu0 0.0
        %1046 = vmatmul.mubr.f32.gmra.mrb[0].mxu0 %v811
        %v1047 = vpop.f32.mrb[0].mxu0
        %v1048 = vadd.f32 0.0, %v1047
        %v1049 = vpop.f32.mrb[0].mxu0
        %v1050 = vadd.f32 0.0, %v1049
        %1051 = vmatprep.mubr.f32.mxu0 0.0
        %1052 = vmatmul.mubr.f32.gmra.mrb[0].mxu0 %v814
        %v1053 = vpop.f32.mrb[0].mxu0
        %v1054 = vadd.f32 0.0, %v1053
        %v1055 = vpop.f32.mrb[0].mxu0
        %v1056 = vadd.f32 0.0, %v1055
        %1057 = vmatprep.mubr.f32.mxu0 0.0
        %1058 = vmatmul.mubr.f32.gmra.mrb[0].mxu0 %v817
        %v1059 = vpop.f32.mrb[0].mxu0
        %v1060 = vadd.f32 0.0, %v1059
        %v1061 = vpop.f32.mrb[0].mxu0
        %v1062 = vadd.f32 0.0, %v1061
        %1063 = vmatprep.mubr.f32.mxu0 0.0
        %1064 = vmatmul.mubr.f32.gmra.mrb[0].mxu0 %v820
        %v1065 = vpop.f32.mrb[0].mxu0
        %v1066 = vadd.f32 0.0, %v1065
        %v1067 = vpop.f32.mrb[0].mxu0
        %v1068 = vadd.f32 0.0, %v1067
        %1069 = vmatprep.mubr.f32.mxu0 0.0
        %1070 = vmatmul.mubr.f32.gmra.mrb[0].mxu0 %v823
        %v1071 = vpop.f32.mrb[0].mxu0
        %v1072 = vadd.f32 0.0, %v1071
        %v1073 = vpop.f32.mrb[0].mxu0
        %v1074 = vadd.f32 0.0, %v1073
        %1075 = vmatprep.mubr.f32.mxu0 0.0
        %1076 = vmatmul.mubr.f32.gmra.mrb[0].mxu0 %v826
        %v1077 = vpop.f32.mrb[0].mxu0
        %v1078 = vadd.f32 0.0, %v1077
        %v1079 = vpop.f32.mrb[0].mxu0
        %v1080 = vadd.f32 0.0, %v1079
        %1081 = vmatprep.mubr.f32.mxu0 0.0
        %1082 = vmatmul.mubr.f32.gmra.mrb[0].mxu0 %v829
        %v1083 = vpop.f32.mrb[0].mxu0
        %v1084 = vadd.f32 0.0, %v1083
        %v1085 = vpop.f32.mrb[0].mxu0
        %v1086 = vadd.f32 0.0, %v1085
        %1087 = vdwg.mxu0
        %v1088 = vmax.f32 %v898, %v910
        %v1089 = vmax.f32 %v904, %v916
        %v1090 = vmax.f32 %v1088, %v922
        %v1091 = vmax.f32 %v1089, %v928
        %v1092 = vmax.f32 %v1090, %v934
        %v1093 = vmax.f32 %v1091, %v940
        %v1094 = vmax.f32 %v1092, %v946
        %v1095 = vmax.f32 %v1093, %v952
        %v1096 = vmax.f32 %v1094, %v958
        %v1097 = vmax.f32 %v1095, %v964
        %v1098 = vmax.f32 %v1096, %v970
        %v1099 = vmax.f32 %v1097, %v976
        %v1100 = vmax.f32 %v1098, %v982
        %v1101 = vmax.f32 %v1099, %v988
        %v1102 = vmax.f32 %v1100, %v994
        %v1103 = vmax.f32 %v1101, %v1000
        %v1104 = vmax.f32 %v1102, %v1006
        %v1105 = vmax.f32 %v1103, %v1012
        %v1106 = vmax.f32 %v1104, %v1018
        %v1107 = vmax.f32 %v1105, %v1024
        %v1108 = vmax.f32 %v1106, %v1030
        %v1109 = vmax.f32 %v1107, %v1036
        %v1110 = vmax.f32 %v1108, %v1042
        %v1111 = vmax.f32 %v1109, %v1048
        %v1112 = vmax.f32 %v1110, %v1054
        %v1113 = vmax.f32 %v1111, %v1060
        %v1114 = vmax.f32 %v1112, %v1066
        %v1115 = vmax.f32 %v1113, %v1072
        %v1116 = vmax.f32 %v1114, %v1078
        %v1117 = vmax.f32 %v1115, %v1084
        %v1118 = vmax.f32 %v1116, %v1117
        %v1119 = vrot.slane %v1118, 4
        %v1120 = vmax.f32 %v1118, %v1119
        %v1121 = vrot.slane %v1120, 2
        %v1122 = vmax.f32 %v1120, %v1121
        %v1123 = vrot.slane %v1122, 1
        %v1124 = vmax.f32 %v1122, %v1123
        %v1125 = vmax.f32 %v900, %v912
        %v1126 = vmax.f32 %v906, %v918
        %v1127 = vmax.f32 %v1125, %v924
        %v1128 = vmax.f32 %v1126, %v930
        %v1129 = vmax.f32 %v1127, %v936
        %v1130 = vmax.f32 %v1128, %v942
        %v1131 = vmax.f32 %v1129, %v948
        %v1132 = vmax.f32 %v1130, %v954
        %v1133 = vmax.f32 %v1131, %v960
        %v1134 = vmax.f32 %v1132, %v966
        %v1135 = vmax.f32 %v1133, %v972
        %v1136 = vmax.f32 %v1134, %v978
        %v1137 = vmax.f32 %v1135, %v984
        %v1138 = vmax.f32 %v1136, %v990
        %v1139 = vmax.f32 %v1137, %v996
        %v1140 = vmax.f32 %v1138, %v1002
        %v1141 = vmax.f32 %v1139, %v1008
        %v1142 = vmax.f32 %v1140, %v1014
        %v1143 = vmax.f32 %v1141, %v1020
        %v1144 = vmax.f32 %v1142, %v1026
        %v1145 = vmax.f32 %v1143, %v1032
        %v1146 = vmax.f32 %v1144, %v1038
        %v1147 = vmax.f32 %v1145, %v1044
        %v1148 = vmax.f32 %v1146, %v1050
        %v1149 = vmax.f32 %v1147, %v1056
        %v1150 = vmax.f32 %v1148, %v1062
        %v1151 = vmax.f32 %v1149, %v1068
        %v1152 = vmax.f32 %v1150, %v1074
        %v1153 = vmax.f32 %v1151, %v1080
        %v1154 = vmax.f32 %v1152, %v1086
        %v1155 = vmax.f32 %v1153, %v1154
        %v1156 = vrot.slane %v1155, 4
        %v1157 = vmax.f32 %v1155, %v1156
        %v1158 = vrot.slane %v1157, 2
        %v1159 = vmax.f32 %v1157, %v1158
        %v1160 = vrot.slane %v1159, 1
        %v1161 = vmax.f32 %v1159, %v1160
        %v1162 = vsub.f32 %v898, %v1124
        %v1163 = vsub.f32 %v900, %v1161
        %v1164 = vsub.f32 %v904, %v1124
        %v1165 = vsub.f32 %v906, %v1161
        %v1166 = vsub.f32 %v910, %v1124
        %v1167 = vsub.f32 %v912, %v1161
        %v1168 = vsub.f32 %v916, %v1124
        %v1169 = vsub.f32 %v918, %v1161
        %v1170 = vsub.f32 %v922, %v1124
        %v1171 = vsub.f32 %v924, %v1161
        %v1172 = vsub.f32 %v928, %v1124
        %v1173 = vsub.f32 %v930, %v1161
        %v1174 = vsub.f32 %v934, %v1124
        %v1175 = vsub.f32 %v936, %v1161
        %v1176 = vsub.f32 %v940, %v1124
        %v1177 = vsub.f32 %v942, %v1161
        %v1178 = vsub.f32 %v946, %v1124
        %v1179 = vsub.f32 %v948, %v1161
        %v1180 = vsub.f32 %v952, %v1124
        %v1181 = vsub.f32 %v954, %v1161
        %v1182 = vsub.f32 %v958, %v1124
        %v1183 = vsub.f32 %v960, %v1161
        %v1184 = vsub.f32 %v964, %v1124
        %v1185 = vsub.f32 %v966, %v1161
        %v1186 = vsub.f32 %v970, %v1124
        %v1187 = vsub.f32 %v972, %v1161
        %v1188 = vsub.f32 %v976, %v1124
        %v1189 = vsub.f32 %v978, %v1161
        %v1190 = vsub.f32 %v982, %v1124
        %v1191 = vsub.f32 %v984, %v1161
        %v1192 = vsub.f32 %v988, %v1124
        %v1193 = vsub.f32 %v990, %v1161
        %v1194 = vsub.f32 %v994, %v1124
        %v1195 = vsub.f32 %v996, %v1161
        %v1196 = vsub.f32 %v1000, %v1124
        %v1197 = vsub.f32 %v1002, %v1161
        %v1198 = vsub.f32 %v1006, %v1124
        %v1199 = vsub.f32 %v1008, %v1161
        %v1200 = vsub.f32 %v1012, %v1124
        %v1201 = vsub.f32 %v1014, %v1161
        %v1202 = vsub.f32 %v1018, %v1124
        %v1203 = vsub.f32 %v1020, %v1161
        %v1204 = vsub.f32 %v1024, %v1124
        %v1205 = vsub.f32 %v1026, %v1161
        %v1206 = vsub.f32 %v1030, %v1124
        %v1207 = vsub.f32 %v1032, %v1161
        %v1208 = vsub.f32 %v1036, %v1124
        %v1209 = vsub.f32 %v1038, %v1161
        %v1210 = vsub.f32 %v1042, %v1124
        %v1211 = vsub.f32 %v1044, %v1161
        %v1212 = vsub.f32 %v1048, %v1124
        %v1213 = vsub.f32 %v1050, %v1161
        %v1214 = vsub.f32 %v1054, %v1124
        %v1215 = vsub.f32 %v1056, %v1161
        %v1216 = vsub.f32 %v1060, %v1124
        %v1217 = vsub.f32 %v1062, %v1161
        %v1218 = vsub.f32 %v1066, %v1124
        %v1219 = vsub.f32 %v1068, %v1161
        %v1220 = vsub.f32 %v1072, %v1124
        %v1221 = vsub.f32 %v1074, %v1161
        %v1222 = vsub.f32 %v1078, %v1124
        %v1223 = vsub.f32 %v1080, %v1161
        %v1224 = vsub.f32 %v1084, %v1124
        %v1225 = vsub.f32 %v1086, %v1161
        %v1226 = vmul.f32 %v1162, 1.442695
        %v1227 = vpow.pop %v1226
        %v1228 = vmul.f32 %v1163, 1.442695
        %v1229 = vpow.pop %v1228
        %v1230 = vmul.f32 %v1164, 1.442695
        %v1231 = vpow.pop %v1230
        %v1232 = vmul.f32 %v1165, 1.442695
        %v1233 = vpow.pop %v1232
        %v1234 = vmul.f32 %v1166, 1.442695
        %v1235 = vpow.pop %v1234
        %v1236 = vmul.f32 %v1167, 1.442695
        %v1237 = vpow.pop %v1236
        %v1238 = vmul.f32 %v1168, 1.442695
        %v1239 = vpow.pop %v1238
        %v1240 = vmul.f32 %v1169, 1.442695
        %v1241 = vpow.pop %v1240
        %v1242 = vmul.f32 %v1170, 1.442695
        %v1243 = vpow.pop %v1242
        %v1244 = vmul.f32 %v1171, 1.442695
        %v1245 = vpow.pop %v1244
        %v1246 = vmul.f32 %v1172, 1.442695
        %v1247 = vpow.pop %v1246
        %v1248 = vmul.f32 %v1173, 1.442695
        %v1249 = vpow.pop %v1248
        %v1250 = vmul.f32 %v1174, 1.442695
        %v1251 = vpow.pop %v1250
        %v1252 = vmul.f32 %v1175, 1.442695
        %v1253 = vpow.pop %v1252
        %v1254 = vmul.f32 %v1176, 1.442695
        %v1255 = vpow.pop %v1254
        %v1256 = vmul.f32 %v1177, 1.442695
        %v1257 = vpow.pop %v1256
        %v1258 = vmul.f32 %v1178, 1.442695
        %v1259 = vpow.pop %v1258
        %v1260 = vmul.f32 %v1179, 1.442695
        %v1261 = vpow.pop %v1260
        %v1262 = vmul.f32 %v1180, 1.442695
        %v1263 = vpow.pop %v1262
        %v1264 = vmul.f32 %v1181, 1.442695
        %v1265 = vpow.pop %v1264
        %v1266 = vmul.f32 %v1182, 1.442695
        %v1267 = vpow.pop %v1266
        %v1268 = vmul.f32 %v1183, 1.442695
        %v1269 = vpow.pop %v1268
        %v1270 = vmul.f32 %v1184, 1.442695
        %v1271 = vpow.pop %v1270
        %v1272 = vmul.f32 %v1185, 1.442695
        %v1273 = vpow.pop %v1272
        %v1274 = vmul.f32 %v1186, 1.442695
        %v1275 = vpow.pop %v1274
        %v1276 = vmul.f32 %v1187, 1.442695
        %v1277 = vpow.pop %v1276
        %v1278 = vmul.f32 %v1188, 1.442695
        %v1279 = vpow.pop %v1278
        %v1280 = vmul.f32 %v1189, 1.442695
        %v1281 = vpow.pop %v1280
        %v1282 = vmul.f32 %v1190, 1.442695
        %v1283 = vpow.pop %v1282
        %v1284 = vmul.f32 %v1191, 1.442695
        %v1285 = vpow.pop %v1284
        %v1286 = vmul.f32 %v1192, 1.442695
        %v1287 = vpow.pop %v1286
        %v1288 = vmul.f32 %v1193, 1.442695
        %v1289 = vpow.pop %v1288
        %v1290 = vmul.f32 %v1194, 1.442695
        %v1291 = vpow.pop %v1290
        %v1292 = vmul.f32 %v1195, 1.442695
        %v1293 = vpow.pop %v1292
        %v1294 = vmul.f32 %v1196, 1.442695
        %v1295 = vpow.pop %v1294
        %v1296 = vmul.f32 %v1197, 1.442695
        %v1297 = vpow.pop %v1296
        %v1298 = vmul.f32 %v1198, 1.442695
        %v1299 = vpow.pop %v1298
        %v1300 = vmul.f32 %v1199, 1.442695
        %v1301 = vpow.pop %v1300
        %v1302 = vmul.f32 %v1200, 1.442695
        %v1303 = vpow.pop %v1302
        %v1304 = vmul.f32 %v1201, 1.442695
        %v1305 = vpow.pop %v1304
        %v1306 = vmul.f32 %v1202, 1.442695
        %v1307 = vpow.pop %v1306
        %v1308 = vmul.f32 %v1203, 1.442695
        %v1309 = vpow.pop %v1308
        %v1310 = vmul.f32 %v1204, 1.442695
        %v1311 = vpow.pop %v1310
        %v1312 = vmul.f32 %v1205, 1.442695
        %v1313 = vpow.pop %v1312
        %v1314 = vmul.f32 %v1206, 1.442695
        %v1315 = vpow.pop %v1314
        %v1316 = vmul.f32 %v1207, 1.442695
        %v1317 = vpow.pop %v1316
        %v1318 = vmul.f32 %v1208, 1.442695
        %v1319 = vpow.pop %v1318
        %v1320 = vmul.f32 %v1209, 1.442695
        %v1321 = vpow.pop %v1320
        %v1322 = vmul.f32 %v1210, 1.442695
        %v1323 = vpow.pop %v1322
        %v1324 = vmul.f32 %v1211, 1.442695
        %v1325 = vpow.pop %v1324
        %v1326 = vmul.f32 %v1212, 1.442695
        %v1327 = vpow.pop %v1326
        %v1328 = vmul.f32 %v1213, 1.442695
        %v1329 = vpow.pop %v1328
        %v1330 = vmul.f32 %v1214, 1.442695
        %v1331 = vpow.pop %v1330
        %v1332 = vmul.f32 %v1215, 1.442695
        %v1333 = vpow.pop %v1332
        %v1334 = vmul.f32 %v1216, 1.442695
        %v1335 = vpow.pop %v1334
        %v1336 = vmul.f32 %v1217, 1.442695
        %v1337 = vpow.pop %v1336
        %v1338 = vmul.f32 %v1218, 1.442695
        %v1339 = vpow.pop %v1338
        %v1340 = vmul.f32 %v1219, 1.442695
        %v1341 = vpow.pop %v1340
        %v1342 = vmul.f32 %v1220, 1.442695
        %v1343 = vpow.pop %v1342
        %v1344 = vmul.f32 %v1221, 1.442695
        %v1345 = vpow.pop %v1344
        %v1346 = vmul.f32 %v1222, 1.442695
        %v1347 = vpow.pop %v1346
        %v1348 = vmul.f32 %v1223, 1.442695
        %v1349 = vpow.pop %v1348
        %v1350 = vmul.f32 %v1224, 1.442695
        %v1351 = vpow.pop %v1350
        %v1352 = vmul.f32 %v1225, 1.442695
        %v1353 = vpow.pop %v1352
        %v1354 = vadd.f32 %v1227, %v1231
        %v1355 = vadd.f32 %v1354, %v1235
        %v1356 = vadd.f32 %v1355, %v1239
        %v1357 = vadd.f32 %v1356, %v1243
        %v1358 = vadd.f32 %v1357, %v1247
        %v1359 = vadd.f32 %v1358, %v1251
        %v1360 = vadd.f32 %v1359, %v1255
        %v1361 = vadd.f32 %v1360, %v1259
        %v1362 = vadd.f32 %v1361, %v1263
        %v1363 = vadd.f32 %v1362, %v1267
        %v1364 = vadd.f32 %v1363, %v1271
        %v1365 = vadd.f32 %v1364, %v1275
        %v1366 = vadd.f32 %v1365, %v1279
        %v1367 = vadd.f32 %v1366, %v1283
        %v1368 = vadd.f32 %v1367, %v1287
        %v1369 = vadd.f32 %v1368, %v1291
        %v1370 = vadd.f32 %v1369, %v1295
        %v1371 = vadd.f32 %v1370, %v1299
        %v1372 = vadd.f32 %v1371, %v1303
        %v1373 = vadd.f32 %v1372, %v1307
        %v1374 = vadd.f32 %v1373, %v1311
        %v1375 = vadd.f32 %v1374, %v1315
        %v1376 = vadd.f32 %v1375, %v1319
        %v1377 = vadd.f32 %v1376, %v1323
        %v1378 = vadd.f32 %v1377, %v1327
        %v1379 = vadd.f32 %v1378, %v1331
        %v1380 = vadd.f32 %v1379, %v1335
        %v1381 = vadd.f32 %v1380, %v1339
        %v1382 = vadd.f32 %v1381, %v1343
        %v1383 = vadd.f32 %v1382, %v1347
        %v1384 = vadd.f32 %v1383, %v1351
        %v1385 = vrot.slane %v1384, 4
        %v1386 = vadd.f32 %v1384, %v1385
        %v1387 = vrot.slane %v1386, 2
        %v1388 = vadd.f32 %v1386, %v1387
        %v1389 = vrot.slane %v1388, 1
        %v1390 = vadd.f32 %v1388, %v1389
        %v1391 = vadd.f32 %v1229, %v1233
        %v1392 = vadd.f32 %v1391, %v1237
        %v1393 = vadd.f32 %v1392, %v1241
        %v1394 = vadd.f32 %v1393, %v1245
        %v1395 = vadd.f32 %v1394, %v1249
        %v1396 = vadd.f32 %v1395, %v1253
        %v1397 = vadd.f32 %v1396, %v1257
        %v1398 = vadd.f32 %v1397, %v1261
        %v1399 = vadd.f32 %v1398, %v1265
        %v1400 = vadd.f32 %v1399, %v1269
        %v1401 = vadd.f32 %v1400, %v1273
        %v1402 = vadd.f32 %v1401, %v1277
        %v1403 = vadd.f32 %v1402, %v1281
        %v1404 = vadd.f32 %v1403, %v1285
        %v1405 = vadd.f32 %v1404, %v1289
        %v1406 = vadd.f32 %v1405, %v1293
        %v1407 = vadd.f32 %v1406, %v1297
        %v1408 = vadd.f32 %v1407, %v1301
        %v1409 = vadd.f32 %v1408, %v1305
        %v1410 = vadd.f32 %v1409, %v1309
        %v1411 = vadd.f32 %v1410, %v1313
        %v1412 = vadd.f32 %v1411, %v1317
        %v1413 = vadd.f32 %v1412, %v1321
        %v1414 = vadd.f32 %v1413, %v1325
        %v1415 = vadd.f32 %v1414, %v1329
        %v1416 = vadd.f32 %v1415, %v1333
        %v1417 = vadd.f32 %v1416, %v1337
        %v1418 = vadd.f32 %v1417, %v1341
        %v1419 = vadd.f32 %v1418, %v1345
        %v1420 = vadd.f32 %v1419, %v1349
        %v1421 = vadd.f32 %v1420, %v1353
        %v1422 = vrot.slane %v1421, 4
        %v1423 = vadd.f32 %v1421, %v1422
        %v1424 = vrot.slane %v1423, 2
        %v1425 = vadd.f32 %v1423, %v1424
        %v1426 = vrot.slane %v1425, 1
        %v1427 = vadd.f32 %v1425, %v1426
        %v1428 = vld [vmem:[#allocation4] sm:$0xff]
        %v1429 = vpack.c.bf16 %v1231, %v1227
        %v1430 = vpack.c.bf16 %v1233, %v1229
        %v1431 = vpack.c.bf16 %v1239, %v1235
        %v1432 = vpack.c.bf16 %v1241, %v1237
        %v1433 = vpack.c.bf16 %v1247, %v1243
        %v1434 = vpack.c.bf16 %v1249, %v1245
        %v1435 = vpack.c.bf16 %v1255, %v1251
        %v1436 = vpack.c.bf16 %v1257, %v1253
        %v1437 = vpack.c.bf16 %v1263, %v1259
        %v1438 = vpack.c.bf16 %v1265, %v1261
        %v1439 = vpack.c.bf16 %v1271, %v1267
        %v1440 = vpack.c.bf16 %v1273, %v1269
        %v1441 = vpack.c.bf16 %v1279, %v1275
        %v1442 = vpack.c.bf16 %v1281, %v1277
        %v1443 = vpack.c.bf16 %v1287, %v1283
        %v1444 = vpack.c.bf16 %v1289, %v1285
        %v1445 = vpack.c.bf16 %v1295, %v1291
        %v1446 = vpack.c.bf16 %v1297, %v1293
        %v1447 = vpack.c.bf16 %v1303, %v1299
        %v1448 = vpack.c.bf16 %v1305, %v1301
        %v1449 = vpack.c.bf16 %v1311, %v1307
        %v1450 = vpack.c.bf16 %v1313, %v1309
        %v1451 = vpack.c.bf16 %v1319, %v1315
        %v1452 = vpack.c.bf16 %v1321, %v1317
        %v1453 = vpack.c.bf16 %v1327, %v1323
        %v1454 = vpack.c.bf16 %v1329, %v1325
        %v1455 = vpack.c.bf16 %v1335, %v1331
        %v1456 = vpack.c.bf16 %v1337, %v1333
        %v1457 = vpack.c.bf16 %v1343, %v1339
        %v1458 = vpack.c.bf16 %v1345, %v1341
        %v1459 = vpack.c.bf16 %v1351, %v1347
        %v1460 = vpack.c.bf16 %v1353, %v1349
        %v1462 = vunpack.c.l.b16 %v1428
        %v1463 = vunpack.c.h.b16 %v1428
        %v1464 = vpack.c.b16 %v1462, %v1462
        %v1465 = vpack.c.b16 %v1463, %v1463
        %1468 = vmatprep.subr.bf16.mxu0 %v1430
        %1469 = vmatpush1.bf16.msra.mxu0 %v1429
        %1470 = vmatprep.subr.bf16.mxu0 %v1432
        %1471 = vmatpush1.bf16.msra.mxu0 %v1431
        %1472 = vmatprep.subr.bf16.mxu0 %v1434
        %1473 = vmatpush1.bf16.msra.mxu0 %v1433
        %1474 = vmatprep.subr.bf16.mxu0 %v1436
        %1475 = vmatpush1.bf16.msra.mxu0 %v1435
        %1476 = vmatprep.subr.bf16.mxu0 %v1438
        %1477 = vmatpush1.bf16.msra.mxu0 %v1437
        %1478 = vmatprep.subr.bf16.mxu0 %v1440
        %1479 = vmatpush1.bf16.msra.mxu0 %v1439
        %1480 = vmatprep.subr.bf16.mxu0 %v1442
        %1481 = vmatpush1.bf16.msra.mxu0 %v1441
        %1482 = vmatprep.subr.bf16.mxu0 %v1444
        %1483 = vmatpush1.bf16.msra.mxu0 %v1443
        %1484 = vmatprep.subr.bf16.mxu0 %v1446
        %1485 = vmatpush1.bf16.msra.mxu0 %v1445
        %1486 = vmatprep.subr.bf16.mxu0 %v1448
        %1487 = vmatpush1.bf16.msra.mxu0 %v1447
        %1488 = vmatprep.subr.bf16.mxu0 %v1450
        %1489 = vmatpush1.bf16.msra.mxu0 %v1449
        %1490 = vmatprep.subr.bf16.mxu0 %v1452
        %1491 = vmatpush1.bf16.msra.mxu0 %v1451
        %1492 = vmatprep.subr.bf16.mxu0 %v1454
        %1493 = vmatpush1.bf16.msra.mxu0 %v1453
        %1494 = vmatprep.subr.bf16.mxu0 %v1456
        %1495 = vmatpush1.bf16.msra.mxu0 %v1455
        %1496 = vmatprep.subr.bf16.mxu0 %v1458
        %1497 = vmatpush1.bf16.msra.mxu0 %v1457
        %1498 = vmatprep.subr.bf16.mxu0 %v1460
        %1499 = vmatpush1.bf16.msra.mxu0 %v1459
        %1500 = vmatprep.mubr.bf16.mxu0 %v1465
        %1501 = vmatmul.mubr.bf16.gmra.mrb[0].mxu0 %v1464
        %v1502 = vpop.f32.mrb[0].mxu0
        %v1503 = vadd.f32 0.0, %v1502
        %v1504 = vpop.f32.mrb[0].mxu0
        %v1505 = vadd.f32 0.0, %v1504
        %v1506 = vpop.f32.mrb[0].mxu0
        %v1507 = vpop.f32.mrb[0].mxu0
        %1508 = vdwg.mxu0
        %v1509 = vrcp.pop %v1390
        %v1510 = vrcp.pop %v1427
        %v1511 = vmul.f32 %v1503, %v1509
        %v1512 = vmul.f32 %v1505, %v1510
        %v1513 = vadd.f32 %v1511, %v700
        %v1514 = vadd.f32 %v1512, %v701
        %1515 = vst [vmem:[%s240] sm:$0xff] %v1513
        %1516 = vst [vmem:[%s240 + $0x8] sm:$0xff] %v1514
        %s1517 = sand.u32 %s133, 1
        %s1518 = scalar_lea.sflag [#allocation7], %s1517
        %s1519 = sand.u32 %s133, 1
        %s1520 = smul.addr %s1519, 16
        %s1521 = scalar_lea.vmem [#allocation10], %s1520
        // Predicated region
        $region49: #{tpu_custom_call.1} parent=35 // pred_check
          %p1522 = pneg %p143
        $region50: #{tpu_custom_call.1} parent=35 // pred_check_branch
          %1524 = sbr.rel (%p1522) target = $region52
        $region51: #{tpu_custom_call.1} parent=35 // pred_region
          %s1525 = smul.u32 2, %s27
          %s1527 = ssub.s32 256, 256
          %1528 = vsyncadd %s1518, %s1527
          %s1529 = smul.addr %s26, 2
          %s1530 = sadd.s32 %s1525, %s1529
          %s1531 = smul.addr %s1530, 128
          %s1532 = scalar_lea.hbm %s4, %s1531
          %s1534 = sshll.u32 %s1521, 4
          %s1535 = int_to_ptr.vmem [resolvable:$true] %s1534
          %1537 = dma.vmem_to_hbm [thread:$0]  %s1535, 256, %s1532, %s1518
        $region52: #{tpu_custom_call.1} parent=35 // pred_fallthru
          _
      $region36: #{tpu_custom_call.1} parent=5 // pred_fallthru
        _
      %p1538 = scmp.le.s32.totalorder 2, %s17
      // Predicated region
      $region53: #{tpu_custom_call.1} parent=5 // pred_check
        %p1539 = pneg %p1538
      $region54: #{tpu_custom_call.1} parent=5 // pred_check_branch
        %1541 = sbr.rel (%p1539) target = $region56
      $region55: #{tpu_custom_call.1} parent=5 // pred_region
        %s1542 = ssub.s32 %s17, 2
        // Predicated region
        $region57: #{tpu_custom_call.1} parent=55 // pred_check
          %p1543 = pneg %p149
        $region58: #{tpu_custom_call.1} parent=55 // pred_check_branch
          %1545 = sbr.rel (%p1543) target = $region60
        $region59: #{tpu_custom_call.1} parent=55 // pred_region
          %s1546 = sand.u32 %s134, 1
          %s1547 = scalar_lea.sflag [#allocation7], %s1546
          %s1548 = sand.u32 %s134, 1
          %s1549 = smul.addr %s1548, 16
          %s1550 = scalar_lea.vmem [#allocation10], %s1549
          %1551 = dma.done %s1547, 256
        $region60: #{tpu_custom_call.1} parent=55 // pred_fallthru
          _
      $region56: #{tpu_custom_call.1} parent=5 // pred_fallthru
        _
    $region6: #{tpu_custom_call.1} parent=1 // loop_footer
      %s21 = sadd.s32 1, %s17
    $region7: #{tpu_custom_call.1} parent=1 // loop_footer_branch
      %16 = sbr.rel target = $region3
    $region8: #{tpu_custom_call.1} parent=1 // loop_exit
      _
    %1552 = vsyncpa [#allocation6], 1
    %s1553 = scalar_lea.sflag [#allocation6], 1
    %1554 = vsyncpa %s1553, 1
    %1555 = vsyncpa [#allocation9], 1
    %1556 = vsyncpa [#allocation7], 1
    %s1557 = scalar_lea.sflag [#allocation7], 1
    %1558 = vsyncpa %s1557, 1

</llo_original>
